<compile_context>
chip_gen: v6e
topology: v6e:2x2x1
jax: 0.10.0
libtpu: 0.0.40
codegen_flags: <defaults>
</compile_context>

<pallas_src>
import functools

import jax
import jax.numpy as jnp
from jax.experimental import pallas as pl
from jax.experimental.pallas import tpu as pltpu


def _round_up(x, m):
    return ((x + m - 1) // m) * m


def gru_kernel(gi_ref, whh_ref, bhhn_ref, out_ref, h_ref, *, t_total, unroll):
    """One (batch-tile, time-chunk) grid step of the GRU recurrence.

    gi_ref  : (T_chunk, Bt, 3*Hp) bf16  precomputed input gates (r/z biases folded in)
    whh_ref : (Hp, 3*Hp)          bf16  W_hh^T, gate order [r, z, n], 128-aligned gate slabs
    bhhn_ref: (1, Hp)             f32   hidden bias of the n gate (multiplied by r)
    out_ref : (Bt, Hp)            f32   last hidden state (lane-dense)
    h_ref   : (Bt, Hp)            f32   VMEM scratch carrying h across time chunks
    """
    t_chunk = gi_ref.shape[0]
    hp = whh_ref.shape[0]
    tc = pl.program_id(1)

    @pl.when(tc == 0)
    def _():
        h_ref[...] = jnp.zeros_like(h_ref)

    bhh_n = bhhn_ref[...]  # (1, Hp); sublane-broadcasts in the add below (1 vreg live)

    def step(t, h):
        t_global = tc * t_chunk + t
        gi = gi_ref[t].astype(jnp.float32)                       # (Bt, 3Hp) gate math in f32
        # Re-read W_hh^T from VMEM each step (do NOT hoist): lets the register allocator reuse
        # the same vregs per iteration instead of keeping a huge live range across the serial
        # unrolled loop.  bf16 operands, f32 accumulation on the MXU.
        gh = jnp.dot(h.astype(jnp.bfloat16), whh_ref[...],
                     preferred_element_type=jnp.float32)         # (Bt, 3Hp)
        # One wide sigmoid covers both r and z; the slices are 128-lane aligned (no XLU work).
        rz = jax.nn.sigmoid(gi[:, :2 * hp] + gh[:, :2 * hp])
        r = rz[:, :hp]
        z = rz[:, hp:2 * hp]
        n = jnp.tanh(gi[:, 2 * hp:] + r * (gh[:, 2 * hp:] + bhh_n))
        h_new = n + z * (h - n)                                  # == (1-z)*n + z*h, one fewer mul
        # Mask padded timesteps (T padded up to a multiple of the time chunk).
        return jnp.where(t_global < t_total, h_new, h)

    h = jax.lax.fori_loop(0, t_chunk, step, h_ref[...], unroll=unroll)
    h_ref[...] = h

    @pl.when(tc == pl.num_programs(1) - 1)
    def _():
        out_ref[...] = h.astype(out_ref.dtype)


def gru_net_forward(tokens, emb_table, w_ih, w_hh, b_ih, b_hh, w_fc, b_fc,
                    *, gi_chunk_budget_bytes=4 << 20):
    """tokens: (B, T) int32.  Returns logits (B, C).  PyTorch GRU gate order [r, z, n]."""
    B, T = tokens.shape
    V, E = emb_table.shape
    H = w_hh.shape[1]

    Bp = _round_up(B, 16)        # 16-row pad: covers bf16 (16) and f32 (8) sublane tiling
    Hp = _round_up(H, 128)       # lane alignment -> each gate slab is a full 128-wide slice
    b_tile = min(Bp, 128)        # fill MXU rows when batch permits; >=2 tiles -> 2 TCs on v7x
    n_btiles = Bp // b_tile

    # Time chunk sized so the double-buffered bf16 gi chunk fits a small VMEM budget
    # (conservative for v7x's 64 MiB VMEM / 32 MiB scoped default; re-derive per generation).
    per_step_bytes = b_tile * 3 * Hp * 2
    t_chunk = int(max(1, min(T, gi_chunk_budget_bytes // (2 * per_step_bytes))))
    Tp = _round_up(T, t_chunk)

    # ---- hoisted input projection over the vocab (runs once, MXU-shaped) --------------------
    # Fold b_ih into every gate; fold b_hh into r and z (pure adds).  b_hh_n stays separate
    # because it is multiplied by r inside the recurrence.
    bias_fold = jnp.concatenate([b_ih[:2 * H] + b_hh[:2 * H], b_ih[2 * H:]])   # (3H,)
    emb_proj = emb_table @ w_ih.T + bias_fold                                  # (V, 3H) f32
    emb_proj = emb_proj.reshape(V, 3, H)
    emb_proj = jnp.pad(emb_proj, ((0, 0), (0, 0), (0, Hp - H))).reshape(V, 3 * Hp)
    emb_proj = emb_proj.astype(jnp.bfloat16)                                   # halve gi bytes

    # TODO(synk): fuse this gather into the kernel (scalar-prefetched tokens + manual DMA of
    # emb_proj rows) to remove the gi HBM round trip for long sequences.
    gi = jnp.take(emb_proj, tokens.T, axis=0)                                  # (T, B, 3Hp)
    gi = jnp.pad(gi, ((0, Tp - T), (0, Bp - B), (0, 0)))                       # (Tp, Bp, 3Hp)

    # ---- recurrent weights, per-gate padded, bf16 MXU operand --------------------------------
    whh_t = w_hh.T.reshape(H, 3, H)
    whh_t = jnp.pad(whh_t, ((0, Hp - H), (0, 0), (0, Hp - H))).reshape(Hp, 3 * Hp)
    whh_t = whh_t.astype(jnp.bfloat16)

    bhh_n = jnp.pad(b_hh[2 * H:], (0, Hp - H)).reshape(1, Hp).astype(jnp.float32)

    kernel = functools.partial(gru_kernel, t_total=T, unroll=min(t_chunk, 8))

    grid_spec = pltpu.PrefetchScalarGridSpec(
        num_scalar_prefetch=0,
        grid=(n_btiles, Tp // t_chunk),                # (batch tiles, time chunks)
        in_specs=[
            pl.BlockSpec((t_chunk, b_tile, 3 * Hp), lambda bt, tc: (tc, bt, 0)),   # gi stream
            pl.BlockSpec((Hp, 3 * Hp), lambda bt, tc: (0, 0)),                     # W_hh^T
            pl.BlockSpec((1, Hp), lambda bt, tc: (0, 0)),                          # b_hh (n)
        ],
        out_specs=pl.BlockSpec((b_tile, Hp), lambda bt, tc: (bt, 0)),              # h_last
        scratch_shapes=[pltpu.VMEM((b_tile, Hp), jnp.float32)],                    # h carry
    )

    h_last = pl.pallas_call(
        kernel,
        out_shape=jax.ShapeDtypeStruct((Bp, Hp), jnp.float32),
        grid_spec=grid_spec,
        compiler_params=pltpu.CompilerParams(
            dimension_semantics=("parallel", "arbitrary"),   # batch across TCs; time is serial
            vmem_limit_bytes=32 * 1024 * 1024,
        ),
    )(gi, whh_t, bhh_n)

    # Final linear layer runs exactly once -> keep it in the wrapper (kernel output stays
    # lane-dense; W_fc / b_fc never enter the kernel's VMEM footprint).
    return h_last[:B, :H] @ w_fc.T + b_fc


def gru_net_reference(tokens, emb_table, w_ih, w_hh, b_ih, b_hh, w_fc, b_fc):
    """Pure-JAX f32 reference following PyTorch GRU semantics."""
    H = w_hh.shape[1]
    x_emb = jnp.take(emb_table, tokens, axis=0)           # (B, T, E)
    B = x_emb.shape[0]

    def step(h, x_t):
        gi = x_t @ w_ih.T + b_ih
        gh = h @ w_hh.T + b_hh
        i_r, i_z, i_n = gi[:, :H], gi[:, H:2 * H], gi[:, 2 * H:]
        h_r, h_z, h_n = gh[:, :H], gh[:, H:2 * H], gh[:, 2 * H:]
        r = jax.nn.sigmoid(i_r + h_r)
        z = jax.nn.sigmoid(i_z + h_z)
        n = jnp.tanh(i_n + r * h_n)
        h_new = (1.0 - z) * n + z * h
        return h_new, None

    h0 = jnp.zeros((B, H), jnp.float32)
    h_last, _ = jax.lax.scan(step, h0, jnp.transpose(x_emb, (1, 0, 2)))
    return h_last @ w_fc.T + b_fc


if __name__ == "__main__":
    # small shapes consistent with the forward pass
    B, T = 2, 8          # batch, sequence length
    V, E = 50, 16        # vocab size, embedding dim
    H, C = 32, 4         # hidden size, num classes

    key = jax.random.PRNGKey(0)
    ks = jax.random.split(key, 8)
    scale = 1.0 / jnp.sqrt(H)

    tokens = jax.random.randint(ks[0], (B, T), 0, V, dtype=jnp.int32)
    emb_table = jax.random.normal(ks[1], (V, E), jnp.float32)
    w_ih = jax.random.uniform(ks[2], (3 * H, E), jnp.float32, -scale, scale)
    w_hh = jax.random.uniform(ks[3], (3 * H, H), jnp.float32, -scale, scale)
    b_ih = jax.random.uniform(ks[4], (3 * H,), jnp.float32, -scale, scale)
    b_hh = jax.random.uniform(ks[5], (3 * H,), jnp.float32, -scale, scale)
    w_fc = jax.random.uniform(ks[6], (C, H), jnp.float32, -scale, scale)
    b_fc = jax.random.uniform(ks[7], (C,), jnp.float32, -scale, scale)

    out = gru_net_forward(tokens, emb_table, w_ih, w_hh, b_ih, b_hh, w_fc, b_fc)
    out = jax.block_until_ready(out)

    ref = gru_net_reference(tokens, emb_table, w_ih, w_hh, b_ih, b_hh, w_fc, b_fc)
    assert out.shape == (B, C)
    # Tolerance loosened vs the pure-f32 reference because the kernel uses bf16 matmul operands
    # (and bf16-streamed gi) with f32 accumulation, per the performance feedback.
    assert jnp.allclose(out, ref, rtol=5e-2, atol=5e-2), "mismatch vs reference"

    print("KERNEL_OK")
</pallas_src>

<mosaic_0001>
module attributes {stable_mosaic.version = 11 : i64} {
  func.func @gru_kernel(%arg0: i32, %arg1: i32, %arg2: memref<8x16x384xbf16, #tpu.memory_space<vmem>>, %arg3: memref<128x384xbf16, #tpu.memory_space<vmem>>, %arg4: memref<1x128xf32, #tpu.memory_space<vmem>>, %arg5: memref<16x128xf32, #tpu.memory_space<vmem>>, %arg6: memref<16x128xf32, #tpu.memory_space<vmem>>) attributes {dimension_semantics = [#tpu.dimension_semantics<parallel>, #tpu.dimension_semantics<arbitrary>], iteration_bounds = array<i64: 1, 1>, scalar_prefetch = 0 : i64, scratch_operands = 1 : i64, tpu.core_type = #tpu.core_type<tc>, window_params = [{transform_indices = @transform_0, window_bounds = array<i64: 8, 16, 384>}, {pipeline_mode = #tpu.pipeline_mode<synchronous>, transform_indices = @transform_1, window_bounds = array<i64: 128, 384>}, {pipeline_mode = #tpu.pipeline_mode<synchronous>, transform_indices = @transform_2, window_bounds = array<i64: 1, 128>}, {transform_indices = @transform_3, window_bounds = array<i64: 16, 128>}]} {
    %c0_i32 = arith.constant 0 : i32
    %0 = arith.cmpi eq, %arg1, %c0_i32 : i32
    %1 = arith.extui %0 : i1 to i32
    %c0_i32_0 = arith.constant 0 : i32
    %2 = arith.cmpi ne, %1, %c0_i32_0 : i32
    scf.if %2 {
      %cst_72 = arith.constant 0.000000e+00 : f32
      %257 = vector.broadcast %cst_72 : f32 to vector<16x128xf32>
      %c0_73 = arith.constant 0 : index
      %c0_74 = arith.constant 0 : index
      %258 = vector.load %arg6[%c0_73, %c0_74] : memref<16x128xf32, #tpu.memory_space<vmem>>, vector<16x128xf32>
      tpu.vector_store %arg6[%c0_73, %c0_74], %257 {strides = array<i32>} : memref<16x128xf32, #tpu.memory_space<vmem>>, vector<16x128xf32>,
    } else {
    }
    %c0 = arith.constant 0 : index
    %c0_1 = arith.constant 0 : index
    %3 = vector.load %arg4[%c0, %c0_1] : memref<1x128xf32, #tpu.memory_space<vmem>>, vector<1x128xf32>
    %c0_2 = arith.constant 0 : index
    %c0_3 = arith.constant 0 : index
    %4 = vector.load %arg6[%c0_2, %c0_3] : memref<16x128xf32, #tpu.memory_space<vmem>>, vector<16x128xf32>
    %c0_i32_4 = arith.constant 0 : i32
    %c8_i32 = arith.constant 8 : i32
    %5 = arith.muli %arg1, %c8_i32 : i32
    %6 = arith.addi %5, %c0_i32_4 : i32
    %7 = arith.index_cast %c0_i32_4 : i32 to index
    %c0_5 = arith.constant 0 : index
    %c0_6 = arith.constant 0 : index
    %8 = vector.load %arg2[%7, %c0_5, %c0_6] : memref<8x16x384xbf16, #tpu.memory_space<vmem>>, vector<1x16x384xbf16>
    %9 = vector.shape_cast %8 : vector<1x16x384xbf16> to vector<16x384xbf16>
    %10 = arith.extf %9 : vector<16x384xbf16> to vector<16x384xf32>
    %11 = arith.truncf %4 : vector<16x128xf32> to vector<16x128xbf16>
    %c0_7 = arith.constant 0 : index
    %c0_8 = arith.constant 0 : index
    %12 = vector.load %arg3[%c0_7, %c0_8] : memref<128x384xbf16, #tpu.memory_space<vmem>>, vector<128x384xbf16>
    %cst = arith.constant dense<0.000000e+00> : vector<16x384xf32>
    %13 = tpu.matmul %11, %12, %cst {dimension_numbers = #tpu.dot_dimension_numbers<[1], [0], [0], [1], [0, 0, 1, 1], [], []>} : vector<16x128xbf16>, vector<128x384xbf16>, vector<16x384xf32> -> vector<16x384xf32>
    %14 = vector.extract_strided_slice %10 {offsets = [0, 0], sizes = [16, 256], strides = [1, 1]} : vector<16x384xf32> to vector<16x256xf32>
    %15 = vector.extract_strided_slice %13 {offsets = [0, 0], sizes = [16, 256], strides = [1, 1]} : vector<16x384xf32> to vector<16x256xf32>
    %16 = arith.addf %14, %15 : vector<16x256xf32>
    %17 = arith.negf %16 : vector<16x256xf32>
    %18 = math.exp %17 : vector<16x256xf32>
    %cst_9 = arith.constant 1.000000e+00 : f32
    %19 = vector.broadcast %cst_9 : f32 to vector<16x256xf32>
    %20 = arith.addf %19, %18 : vector<16x256xf32>
    %21 = arith.divf %19, %20 : vector<16x256xf32>
    %22 = vector.extract_strided_slice %21 {offsets = [0, 0], sizes = [16, 128], strides = [1, 1]} : vector<16x256xf32> to vector<16x128xf32>
    %23 = vector.extract_strided_slice %21 {offsets = [0, 128], sizes = [16, 128], strides = [1, 1]} : vector<16x256xf32> to vector<16x128xf32>
    %24 = vector.extract_strided_slice %10 {offsets = [0, 256], sizes = [16, 128], strides = [1, 1]} : vector<16x384xf32> to vector<16x128xf32>
    %25 = vector.extract_strided_slice %13 {offsets = [0, 256], sizes = [16, 128], strides = [1, 1]} : vector<16x384xf32> to vector<16x128xf32>
    %26 = vector.broadcast %3 : vector<1x128xf32> to vector<16x128xf32>
    %27 = arith.addf %25, %26 : vector<16x128xf32>
    %28 = arith.mulf %22, %27 : vector<16x128xf32>
    %29 = arith.addf %24, %28 : vector<16x128xf32>
    %30 = math.tanh %29 : vector<16x128xf32>
    %31 = arith.subf %4, %30 : vector<16x128xf32>
    %32 = arith.mulf %23, %31 : vector<16x128xf32>
    %33 = arith.addf %30, %32 : vector<16x128xf32>
    %c8_i32_10 = arith.constant 8 : i32
    %34 = arith.cmpi slt, %6, %c8_i32_10 : i32
    %35 = arith.select %34, %33, %4 : vector<16x128xf32>
    %c1_i32 = arith.constant 1 : i32
    %c8_i32_11 = arith.constant 8 : i32
    %36 = arith.muli %arg1, %c8_i32_11 : i32
    %37 = arith.addi %36, %c1_i32 : i32
    %38 = arith.index_cast %c1_i32 : i32 to index
    %c0_12 = arith.constant 0 : index
    %c0_13 = arith.constant 0 : index
    %39 = vector.load %arg2[%38, %c0_12, %c0_13] : memref<8x16x384xbf16, #tpu.memory_space<vmem>>, vector<1x16x384xbf16>
    %40 = vector.shape_cast %39 : vector<1x16x384xbf16> to vector<16x384xbf16>
    %41 = arith.extf %40 : vector<16x384xbf16> to vector<16x384xf32>
    %42 = arith.truncf %35 : vector<16x128xf32> to vector<16x128xbf16>
    %c0_14 = arith.constant 0 : index
    %c0_15 = arith.constant 0 : index
    %43 = vector.load %arg3[%c0_14, %c0_15] : memref<128x384xbf16, #tpu.memory_space<vmem>>, vector<128x384xbf16>
    %cst_16 = arith.constant dense<0.000000e+00> : vector<16x384xf32>
    %44 = tpu.matmul %42, %43, %cst_16 {dimension_numbers = #tpu.dot_dimension_numbers<[1], [0], [0], [1], [0, 0, 1, 1], [], []>} : vector<16x128xbf16>, vector<128x384xbf16>, vector<16x384xf32> -> vector<16x384xf32>
    %45 = vector.extract_strided_slice %41 {offsets = [0, 0], sizes = [16, 256], strides = [1, 1]} : vector<16x384xf32> to vector<16x256xf32>
    %46 = vector.extract_strided_slice %44 {offsets = [0, 0], sizes = [16, 256], strides = [1, 1]} : vector<16x384xf32> to vector<16x256xf32>
    %47 = arith.addf %45, %46 : vector<16x256xf32>
    %48 = arith.negf %47 : vector<16x256xf32>
    %49 = math.exp %48 : vector<16x256xf32>
    %cst_17 = arith.constant 1.000000e+00 : f32
    %50 = vector.broadcast %cst_17 : f32 to vector<16x256xf32>
    %51 = arith.addf %50, %49 : vector<16x256xf32>
    %52 = arith.divf %50, %51 : vector<16x256xf32>
    %53 = vector.extract_strided_slice %52 {offsets = [0, 0], sizes = [16, 128], strides = [1, 1]} : vector<16x256xf32> to vector<16x128xf32>
    %54 = vector.extract_strided_slice %52 {offsets = [0, 128], sizes = [16, 128], strides = [1, 1]} : vector<16x256xf32> to vector<16x128xf32>
    %55 = vector.extract_strided_slice %41 {offsets = [0, 256], sizes = [16, 128], strides = [1, 1]} : vector<16x384xf32> to vector<16x128xf32>
    %56 = vector.extract_strided_slice %44 {offsets = [0, 256], sizes = [16, 128], strides = [1, 1]} : vector<16x384xf32> to vector<16x128xf32>
    %57 = vector.broadcast %3 : vector<1x128xf32> to vector<16x128xf32>
    %58 = arith.addf %56, %57 : vector<16x128xf32>
    %59 = arith.mulf %53, %58 : vector<16x128xf32>
    %60 = arith.addf %55, %59 : vector<16x128xf32>
    %61 = math.tanh %60 : vector<16x128xf32>
    %62 = arith.subf %35, %61 : vector<16x128xf32>
    %63 = arith.mulf %54, %62 : vector<16x128xf32>
    %64 = arith.addf %61, %63 : vector<16x128xf32>
    %c8_i32_18 = arith.constant 8 : i32
    %65 = arith.cmpi slt, %37, %c8_i32_18 : i32
    %66 = arith.select %65, %64, %35 : vector<16x128xf32>
    %c2_i32 = arith.constant 2 : i32
    %c8_i32_19 = arith.constant 8 : i32
    %67 = arith.muli %arg1, %c8_i32_19 : i32
    %68 = arith.addi %67, %c2_i32 : i32
    %69 = arith.index_cast %c2_i32 : i32 to index
    %c0_20 = arith.constant 0 : index
    %c0_21 = arith.constant 0 : index
    %70 = vector.load %arg2[%69, %c0_20, %c0_21] : memref<8x16x384xbf16, #tpu.memory_space<vmem>>, vector<1x16x384xbf16>
    %71 = vector.shape_cast %70 : vector<1x16x384xbf16> to vector<16x384xbf16>
    %72 = arith.extf %71 : vector<16x384xbf16> to vector<16x384xf32>
    %73 = arith.truncf %66 : vector<16x128xf32> to vector<16x128xbf16>
    %c0_22 = arith.constant 0 : index
    %c0_23 = arith.constant 0 : index
    %74 = vector.load %arg3[%c0_22, %c0_23] : memref<128x384xbf16, #tpu.memory_space<vmem>>, vector<128x384xbf16>
    %cst_24 = arith.constant dense<0.000000e+00> : vector<16x384xf32>
    %75 = tpu.matmul %73, %74, %cst_24 {dimension_numbers = #tpu.dot_dimension_numbers<[1], [0], [0], [1], [0, 0, 1, 1], [], []>} : vector<16x128xbf16>, vector<128x384xbf16>, vector<16x384xf32> -> vector<16x384xf32>
    %76 = vector.extract_strided_slice %72 {offsets = [0, 0], sizes = [16, 256], strides = [1, 1]} : vector<16x384xf32> to vector<16x256xf32>
    %77 = vector.extract_strided_slice %75 {offsets = [0, 0], sizes = [16, 256], strides = [1, 1]} : vector<16x384xf32> to vector<16x256xf32>
    %78 = arith.addf %76, %77 : vector<16x256xf32>
    %79 = arith.negf %78 : vector<16x256xf32>
    %80 = math.exp %79 : vector<16x256xf32>
    %cst_25 = arith.constant 1.000000e+00 : f32
    %81 = vector.broadcast %cst_25 : f32 to vector<16x256xf32>
    %82 = arith.addf %81, %80 : vector<16x256xf32>
    %83 = arith.divf %81, %82 : vector<16x256xf32>
    %84 = vector.extract_strided_slice %83 {offsets = [0, 0], sizes = [16, 128], strides = [1, 1]} : vector<16x256xf32> to vector<16x128xf32>
    %85 = vector.extract_strided_slice %83 {offsets = [0, 128], sizes = [16, 128], strides = [1, 1]} : vector<16x256xf32> to vector<16x128xf32>
    %86 = vector.extract_strided_slice %72 {offsets = [0, 256], sizes = [16, 128], strides = [1, 1]} : vector<16x384xf32> to vector<16x128xf32>
    %87 = vector.extract_strided_slice %75 {offsets = [0, 256], sizes = [16, 128], strides = [1, 1]} : vector<16x384xf32> to vector<16x128xf32>
    %88 = vector.broadcast %3 : vector<1x128xf32> to vector<16x128xf32>
    %89 = arith.addf %87, %88 : vector<16x128xf32>
    %90 = arith.mulf %84, %89 : vector<16x128xf32>
    %91 = arith.addf %86, %90 : vector<16x128xf32>
    %92 = math.tanh %91 : vector<16x128xf32>
    %93 = arith.subf %66, %92 : vector<16x128xf32>
    %94 = arith.mulf %85, %93 : vector<16x128xf32>
    %95 = arith.addf %92, %94 : vector<16x128xf32>
    %c8_i32_26 = arith.constant 8 : i32
    %96 = arith.cmpi slt, %68, %c8_i32_26 : i32
    %97 = arith.select %96, %95, %66 : vector<16x128xf32>
    %c3_i32 = arith.constant 3 : i32
    %c8_i32_27 = arith.constant 8 : i32
    %98 = arith.muli %arg1, %c8_i32_27 : i32
    %99 = arith.addi %98, %c3_i32 : i32
    %100 = arith.index_cast %c3_i32 : i32 to index
    %c0_28 = arith.constant 0 : index
    %c0_29 = arith.constant 0 : index
    %101 = vector.load %arg2[%100, %c0_28, %c0_29] : memref<8x16x384xbf16, #tpu.memory_space<vmem>>, vector<1x16x384xbf16>
    %102 = vector.shape_cast %101 : vector<1x16x384xbf16> to vector<16x384xbf16>
    %103 = arith.extf %102 : vector<16x384xbf16> to vector<16x384xf32>
    %104 = arith.truncf %97 : vector<16x128xf32> to vector<16x128xbf16>
    %c0_30 = arith.constant 0 : index
    %c0_31 = arith.constant 0 : index
    %105 = vector.load %arg3[%c0_30, %c0_31] : memref<128x384xbf16, #tpu.memory_space<vmem>>, vector<128x384xbf16>
    %cst_32 = arith.constant dense<0.000000e+00> : vector<16x384xf32>
    %106 = tpu.matmul %104, %105, %cst_32 {dimension_numbers = #tpu.dot_dimension_numbers<[1], [0], [0], [1], [0, 0, 1, 1], [], []>} : vector<16x128xbf16>, vector<128x384xbf16>, vector<16x384xf32> -> vector<16x384xf32>
    %107 = vector.extract_strided_slice %103 {offsets = [0, 0], sizes = [16, 256], strides = [1, 1]} : vector<16x384xf32> to vector<16x256xf32>
    %108 = vector.extract_strided_slice %106 {offsets = [0, 0], sizes = [16, 256], strides = [1, 1]} : vector<16x384xf32> to vector<16x256xf32>
    %109 = arith.addf %107, %108 : vector<16x256xf32>
    %110 = arith.negf %109 : vector<16x256xf32>
    %111 = math.exp %110 : vector<16x256xf32>
    %cst_33 = arith.constant 1.000000e+00 : f32
    %112 = vector.broadcast %cst_33 : f32 to vector<16x256xf32>
    %113 = arith.addf %112, %111 : vector<16x256xf32>
    %114 = arith.divf %112, %113 : vector<16x256xf32>
    %115 = vector.extract_strided_slice %114 {offsets = [0, 0], sizes = [16, 128], strides = [1, 1]} : vector<16x256xf32> to vector<16x128xf32>
    %116 = vector.extract_strided_slice %114 {offsets = [0, 128], sizes = [16, 128], strides = [1, 1]} : vector<16x256xf32> to vector<16x128xf32>
    %117 = vector.extract_strided_slice %103 {offsets = [0, 256], sizes = [16, 128], strides = [1, 1]} : vector<16x384xf32> to vector<16x128xf32>
    %118 = vector.extract_strided_slice %106 {offsets = [0, 256], sizes = [16, 128], strides = [1, 1]} : vector<16x384xf32> to vector<16x128xf32>
    %119 = vector.broadcast %3 : vector<1x128xf32> to vector<16x128xf32>
    %120 = arith.addf %118, %119 : vector<16x128xf32>
    %121 = arith.mulf %115, %120 : vector<16x128xf32>
    %122 = arith.addf %117, %121 : vector<16x128xf32>
    %123 = math.tanh %122 : vector<16x128xf32>
    %124 = arith.subf %97, %123 : vector<16x128xf32>
    %125 = arith.mulf %116, %124 : vector<16x128xf32>
    %126 = arith.addf %123, %125 : vector<16x128xf32>
    %c8_i32_34 = arith.constant 8 : i32
    %127 = arith.cmpi slt, %99, %c8_i32_34 : i32
    %128 = arith.select %127, %126, %97 : vector<16x128xf32>
    %c4_i32 = arith.constant 4 : i32
    %c8_i32_35 = arith.constant 8 : i32
    %129 = arith.muli %arg1, %c8_i32_35 : i32
    %130 = arith.addi %129, %c4_i32 : i32
    %131 = arith.index_cast %c4_i32 : i32 to index
    %c0_36 = arith.constant 0 : index
    %c0_37 = arith.constant 0 : index
    %132 = vector.load %arg2[%131, %c0_36, %c0_37] : memref<8x16x384xbf16, #tpu.memory_space<vmem>>, vector<1x16x384xbf16>
    %133 = vector.shape_cast %132 : vector<1x16x384xbf16> to vector<16x384xbf16>
    %134 = arith.extf %133 : vector<16x384xbf16> to vector<16x384xf32>
    %135 = arith.truncf %128 : vector<16x128xf32> to vector<16x128xbf16>
    %c0_38 = arith.constant 0 : index
    %c0_39 = arith.constant 0 : index
    %136 = vector.load %arg3[%c0_38, %c0_39] : memref<128x384xbf16, #tpu.memory_space<vmem>>, vector<128x384xbf16>
    %cst_40 = arith.constant dense<0.000000e+00> : vector<16x384xf32>
    %137 = tpu.matmul %135, %136, %cst_40 {dimension_numbers = #tpu.dot_dimension_numbers<[1], [0], [0], [1], [0, 0, 1, 1], [], []>} : vector<16x128xbf16>, vector<128x384xbf16>, vector<16x384xf32> -> vector<16x384xf32>
    %138 = vector.extract_strided_slice %134 {offsets = [0, 0], sizes = [16, 256], strides = [1, 1]} : vector<16x384xf32> to vector<16x256xf32>
    %139 = vector.extract_strided_slice %137 {offsets = [0, 0], sizes = [16, 256], strides = [1, 1]} : vector<16x384xf32> to vector<16x256xf32>
    %140 = arith.addf %138, %139 : vector<16x256xf32>
    %141 = arith.negf %140 : vector<16x256xf32>
    %142 = math.exp %141 : vector<16x256xf32>
    %cst_41 = arith.constant 1.000000e+00 : f32
    %143 = vector.broadcast %cst_41 : f32 to vector<16x256xf32>
    %144 = arith.addf %143, %142 : vector<16x256xf32>
    %145 = arith.divf %143, %144 : vector<16x256xf32>
    %146 = vector.extract_strided_slice %145 {offsets = [0, 0], sizes = [16, 128], strides = [1, 1]} : vector<16x256xf32> to vector<16x128xf32>
    %147 = vector.extract_strided_slice %145 {offsets = [0, 128], sizes = [16, 128], strides = [1, 1]} : vector<16x256xf32> to vector<16x128xf32>
    %148 = vector.extract_strided_slice %134 {offsets = [0, 256], sizes = [16, 128], strides = [1, 1]} : vector<16x384xf32> to vector<16x128xf32>
    %149 = vector.extract_strided_slice %137 {offsets = [0, 256], sizes = [16, 128], strides = [1, 1]} : vector<16x384xf32> to vector<16x128xf32>
    %150 = vector.broadcast %3 : vector<1x128xf32> to vector<16x128xf32>
    %151 = arith.addf %149, %150 : vector<16x128xf32>
    %152 = arith.mulf %146, %151 : vector<16x128xf32>
    %153 = arith.addf %148, %152 : vector<16x128xf32>
    %154 = math.tanh %153 : vector<16x128xf32>
    %155 = arith.subf %128, %154 : vector<16x128xf32>
    %156 = arith.mulf %147, %155 : vector<16x128xf32>
    %157 = arith.addf %154, %156 : vector<16x128xf32>
    %c8_i32_42 = arith.constant 8 : i32
    %158 = arith.cmpi slt, %130, %c8_i32_42 : i32
    %159 = arith.select %158, %157, %128 : vector<16x128xf32>
    %c5_i32 = arith.constant 5 : i32
    %c8_i32_43 = arith.constant 8 : i32
    %160 = arith.muli %arg1, %c8_i32_43 : i32
    %161 = arith.addi %160, %c5_i32 : i32
    %162 = arith.index_cast %c5_i32 : i32 to index
    %c0_44 = arith.constant 0 : index
    %c0_45 = arith.constant 0 : index
    %163 = vector.load %arg2[%162, %c0_44, %c0_45] : memref<8x16x384xbf16, #tpu.memory_space<vmem>>, vector<1x16x384xbf16>
    %164 = vector.shape_cast %163 : vector<1x16x384xbf16> to vector<16x384xbf16>
    %165 = arith.extf %164 : vector<16x384xbf16> to vector<16x384xf32>
    %166 = arith.truncf %159 : vector<16x128xf32> to vector<16x128xbf16>
    %c0_46 = arith.constant 0 : index
    %c0_47 = arith.constant 0 : index
    %167 = vector.load %arg3[%c0_46, %c0_47] : memref<128x384xbf16, #tpu.memory_space<vmem>>, vector<128x384xbf16>
    %cst_48 = arith.constant dense<0.000000e+00> : vector<16x384xf32>
    %168 = tpu.matmul %166, %167, %cst_48 {dimension_numbers = #tpu.dot_dimension_numbers<[1], [0], [0], [1], [0, 0, 1, 1], [], []>} : vector<16x128xbf16>, vector<128x384xbf16>, vector<16x384xf32> -> vector<16x384xf32>
    %169 = vector.extract_strided_slice %165 {offsets = [0, 0], sizes = [16, 256], strides = [1, 1]} : vector<16x384xf32> to vector<16x256xf32>
    %170 = vector.extract_strided_slice %168 {offsets = [0, 0], sizes = [16, 256], strides = [1, 1]} : vector<16x384xf32> to vector<16x256xf32>
    %171 = arith.addf %169, %170 : vector<16x256xf32>
    %172 = arith.negf %171 : vector<16x256xf32>
    %173 = math.exp %172 : vector<16x256xf32>
    %cst_49 = arith.constant 1.000000e+00 : f32
    %174 = vector.broadcast %cst_49 : f32 to vector<16x256xf32>
    %175 = arith.addf %174, %173 : vector<16x256xf32>
    %176 = arith.divf %174, %175 : vector<16x256xf32>
    %177 = vector.extract_strided_slice %176 {offsets = [0, 0], sizes = [16, 128], strides = [1, 1]} : vector<16x256xf32> to vector<16x128xf32>
    %178 = vector.extract_strided_slice %176 {offsets = [0, 128], sizes = [16, 128], strides = [1, 1]} : vector<16x256xf32> to vector<16x128xf32>
    %179 = vector.extract_strided_slice %165 {offsets = [0, 256], sizes = [16, 128], strides = [1, 1]} : vector<16x384xf32> to vector<16x128xf32>
    %180 = vector.extract_strided_slice %168 {offsets = [0, 256], sizes = [16, 128], strides = [1, 1]} : vector<16x384xf32> to vector<16x128xf32>
    %181 = vector.broadcast %3 : vector<1x128xf32> to vector<16x128xf32>
    %182 = arith.addf %180, %181 : vector<16x128xf32>
    %183 = arith.mulf %177, %182 : vector<16x128xf32>
    %184 = arith.addf %179, %183 : vector<16x128xf32>
    %185 = math.tanh %184 : vector<16x128xf32>
    %186 = arith.subf %159, %185 : vector<16x128xf32>
    %187 = arith.mulf %178, %186 : vector<16x128xf32>
    %188 = arith.addf %185, %187 : vector<16x128xf32>
    %c8_i32_50 = arith.constant 8 : i32
    %189 = arith.cmpi slt, %161, %c8_i32_50 : i32
    %190 = arith.select %189, %188, %159 : vector<16x128xf32>
    %c6_i32 = arith.constant 6 : i32
    %c8_i32_51 = arith.constant 8 : i32
    %191 = arith.muli %arg1, %c8_i32_51 : i32
    %192 = arith.addi %191, %c6_i32 : i32
    %193 = arith.index_cast %c6_i32 : i32 to index
    %c0_52 = arith.constant 0 : index
    %c0_53 = arith.constant 0 : index
    %194 = vector.load %arg2[%193, %c0_52, %c0_53] : memref<8x16x384xbf16, #tpu.memory_space<vmem>>, vector<1x16x384xbf16>
    %195 = vector.shape_cast %194 : vector<1x16x384xbf16> to vector<16x384xbf16>
    %196 = arith.extf %195 : vector<16x384xbf16> to vector<16x384xf32>
    %197 = arith.truncf %190 : vector<16x128xf32> to vector<16x128xbf16>
    %c0_54 = arith.constant 0 : index
    %c0_55 = arith.constant 0 : index
    %198 = vector.load %arg3[%c0_54, %c0_55] : memref<128x384xbf16, #tpu.memory_space<vmem>>, vector<128x384xbf16>
    %cst_56 = arith.constant dense<0.000000e+00> : vector<16x384xf32>
    %199 = tpu.matmul %197, %198, %cst_56 {dimension_numbers = #tpu.dot_dimension_numbers<[1], [0], [0], [1], [0, 0, 1, 1], [], []>} : vector<16x128xbf16>, vector<128x384xbf16>, vector<16x384xf32> -> vector<16x384xf32>
    %200 = vector.extract_strided_slice %196 {offsets = [0, 0], sizes = [16, 256], strides = [1, 1]} : vector<16x384xf32> to vector<16x256xf32>
    %201 = vector.extract_strided_slice %199 {offsets = [0, 0], sizes = [16, 256], strides = [1, 1]} : vector<16x384xf32> to vector<16x256xf32>
    %202 = arith.addf %200, %201 : vector<16x256xf32>
    %203 = arith.negf %202 : vector<16x256xf32>
    %204 = math.exp %203 : vector<16x256xf32>
    %cst_57 = arith.constant 1.000000e+00 : f32
    %205 = vector.broadcast %cst_57 : f32 to vector<16x256xf32>
    %206 = arith.addf %205, %204 : vector<16x256xf32>
    %207 = arith.divf %205, %206 : vector<16x256xf32>
    %208 = vector.extract_strided_slice %207 {offsets = [0, 0], sizes = [16, 128], strides = [1, 1]} : vector<16x256xf32> to vector<16x128xf32>
    %209 = vector.extract_strided_slice %207 {offsets = [0, 128], sizes = [16, 128], strides = [1, 1]} : vector<16x256xf32> to vector<16x128xf32>
    %210 = vector.extract_strided_slice %196 {offsets = [0, 256], sizes = [16, 128], strides = [1, 1]} : vector<16x384xf32> to vector<16x128xf32>
    %211 = vector.extract_strided_slice %199 {offsets = [0, 256], sizes = [16, 128], strides = [1, 1]} : vector<16x384xf32> to vector<16x128xf32>
    %212 = vector.broadcast %3 : vector<1x128xf32> to vector<16x128xf32>
    %213 = arith.addf %211, %212 : vector<16x128xf32>
    %214 = arith.mulf %208, %213 : vector<16x128xf32>
    %215 = arith.addf %210, %214 : vector<16x128xf32>
    %216 = math.tanh %215 : vector<16x128xf32>
    %217 = arith.subf %190, %216 : vector<16x128xf32>
    %218 = arith.mulf %209, %217 : vector<16x128xf32>
    %219 = arith.addf %216, %218 : vector<16x128xf32>
    %c8_i32_58 = arith.constant 8 : i32
    %220 = arith.cmpi slt, %192, %c8_i32_58 : i32
    %221 = arith.select %220, %219, %190 : vector<16x128xf32>
    %c7_i32 = arith.constant 7 : i32
    %c8_i32_59 = arith.constant 8 : i32
    %222 = arith.muli %arg1, %c8_i32_59 : i32
    %223 = arith.addi %222, %c7_i32 : i32
    %224 = arith.index_cast %c7_i32 : i32 to index
    %c0_60 = arith.constant 0 : index
    %c0_61 = arith.constant 0 : index
    %225 = vector.load %arg2[%224, %c0_60, %c0_61] : memref<8x16x384xbf16, #tpu.memory_space<vmem>>, vector<1x16x384xbf16>
    %226 = vector.shape_cast %225 : vector<1x16x384xbf16> to vector<16x384xbf16>
    %227 = arith.extf %226 : vector<16x384xbf16> to vector<16x384xf32>
    %228 = arith.truncf %221 : vector<16x128xf32> to vector<16x128xbf16>
    %c0_62 = arith.constant 0 : index
    %c0_63 = arith.constant 0 : index
    %229 = vector.load %arg3[%c0_62, %c0_63] : memref<128x384xbf16, #tpu.memory_space<vmem>>, vector<128x384xbf16>
    %cst_64 = arith.constant dense<0.000000e+00> : vector<16x384xf32>
    %230 = tpu.matmul %228, %229, %cst_64 {dimension_numbers = #tpu.dot_dimension_numbers<[1], [0], [0], [1], [0, 0, 1, 1], [], []>} : vector<16x128xbf16>, vector<128x384xbf16>, vector<16x384xf32> -> vector<16x384xf32>
    %231 = vector.extract_strided_slice %227 {offsets = [0, 0], sizes = [16, 256], strides = [1, 1]} : vector<16x384xf32> to vector<16x256xf32>
    %232 = vector.extract_strided_slice %230 {offsets = [0, 0], sizes = [16, 256], strides = [1, 1]} : vector<16x384xf32> to vector<16x256xf32>
    %233 = arith.addf %231, %232 : vector<16x256xf32>
    %234 = arith.negf %233 : vector<16x256xf32>
    %235 = math.exp %234 : vector<16x256xf32>
    %cst_65 = arith.constant 1.000000e+00 : f32
    %236 = vector.broadcast %cst_65 : f32 to vector<16x256xf32>
    %237 = arith.addf %236, %235 : vector<16x256xf32>
    %238 = arith.divf %236, %237 : vector<16x256xf32>
    %239 = vector.extract_strided_slice %238 {offsets = [0, 0], sizes = [16, 128], strides = [1, 1]} : vector<16x256xf32> to vector<16x128xf32>
    %240 = vector.extract_strided_slice %238 {offsets = [0, 128], sizes = [16, 128], strides = [1, 1]} : vector<16x256xf32> to vector<16x128xf32>
    %241 = vector.extract_strided_slice %227 {offsets = [0, 256], sizes = [16, 128], strides = [1, 1]} : vector<16x384xf32> to vector<16x128xf32>
    %242 = vector.extract_strided_slice %230 {offsets = [0, 256], sizes = [16, 128], strides = [1, 1]} : vector<16x384xf32> to vector<16x128xf32>
    %243 = vector.broadcast %3 : vector<1x128xf32> to vector<16x128xf32>
    %244 = arith.addf %242, %243 : vector<16x128xf32>
    %245 = arith.mulf %239, %244 : vector<16x128xf32>
    %246 = arith.addf %241, %245 : vector<16x128xf32>
    %247 = math.tanh %246 : vector<16x128xf32>
    %248 = arith.subf %221, %247 : vector<16x128xf32>
    %249 = arith.mulf %240, %248 : vector<16x128xf32>
    %250 = arith.addf %247, %249 : vector<16x128xf32>
    %c8_i32_66 = arith.constant 8 : i32
    %251 = arith.cmpi slt, %223, %c8_i32_66 : i32
    %252 = arith.select %251, %250, %221 : vector<16x128xf32>
    %c8_i32_67 = arith.constant 8 : i32
    %c0_68 = arith.constant 0 : index
    %c0_69 = arith.constant 0 : index
    %253 = vector.load %arg6[%c0_68, %c0_69] : memref<16x128xf32, #tpu.memory_space<vmem>>, vector<16x128xf32>
    tpu.vector_store %arg6[%c0_68, %c0_69], %252 {strides = array<i32>} : memref<16x128xf32, #tpu.memory_space<vmem>>, vector<16x128xf32>,
    %c0_i32_70 = arith.constant 0 : i32
    %254 = arith.cmpi eq, %arg1, %c0_i32_70 : i32
    %255 = arith.extui %254 : i1 to i32
    %c0_i32_71 = arith.constant 0 : i32
    %256 = arith.cmpi ne, %255, %c0_i32_71 : i32
    scf.if %256 {
      %c0_72 = arith.constant 0 : index
      %c0_73 = arith.constant 0 : index
      %257 = vector.load %arg5[%c0_72, %c0_73] : memref<16x128xf32, #tpu.memory_space<vmem>>, vector<16x128xf32>
      tpu.vector_store %arg5[%c0_72, %c0_73], %252 {strides = array<i32>} : memref<16x128xf32, #tpu.memory_space<vmem>>, vector<16x128xf32>,
    } else {
    }
    return
  }
  func.func @transform_0(%arg0: i32, %arg1: i32) -> (i32, i32, i32) {
    %c0_i32 = arith.constant 0 : i32
    %c0_i32_0 = arith.constant 0 : i32
    return %arg1, %arg0, %c0_i32 : i32, i32, i32
  }
  func.func @transform_1(%arg0: i32, %arg1: i32) -> (i32, i32) {
    %c0_i32 = arith.constant 0 : i32
    %c0_i32_0 = arith.constant 0 : i32
    %c0_i32_1 = arith.constant 0 : i32
    return %c0_i32, %c0_i32_0 : i32, i32
  }
  func.func @transform_2(%arg0: i32, %arg1: i32) -> (i32, i32) {
    %c0_i32 = arith.constant 0 : i32
    %c0_i32_0 = arith.constant 0 : i32
    %c0_i32_1 = arith.constant 0 : i32
    return %c0_i32, %c0_i32_0 : i32, i32
  }
  func.func @transform_3(%arg0: i32, %arg1: i32) -> (i32, i32) {
    %c0_i32 = arith.constant 0 : i32
    %c0_i32_0 = arith.constant 0 : i32
    return %arg0, %c0_i32 : i32, i32
  }
}

</mosaic_0001>

<llo_original>
// kernel: tpu_custom_call.1
$region0: #{tpu_custom_call.1}
  #allocation0 [shape = 'u32[]', space=smem, size = 0x4, offset = 0x4, fixed_abs, tag = 'smem constant byte address 0x4 - core index']
  #allocation1 [shape = 'u32[144,128]{1,0:T(1,128)}', space=vmem, size = 0x12000, scoped, tag = 'internal scratch']
  #allocation2 [shape = 'f32[16,128]{1,0:T(8,128)}', space=vmem, size = 0x2000, scoped, tag = 'scratch operand']
  %s0 = inlined_call_operand.hbm [shape: bf16[8,16,384], index: 0, kind: input, shape index: {}]
  %s1 = inlined_call_operand.hbm [shape: bf16[128,384], index: 1, kind: input, shape index: {}]
  %s2 = inlined_call_operand.vmem [shape: f32[1,128], index: 2, kind: input, shape index: {}]
  %s3 = inlined_call_operand.hbm [shape: f32[16,128], index: 3, kind: output, shape index: {}]
  %s4 = sld [smem:[#allocation0]]
  $region38: #{tpu_custom_call.1} parent=0
    _
  %s6 = ssub.s32 1, %s4
  %s7 = scalar_select 0, %s6, %s4
  $region1: #{tpu_custom_call.1} parent=0
    #allocation3 [shape = 'u8[98304]{0}', space=vmem, size = 0x18000, scoped, tag = 'input window, operand 0, single buffered']
    #allocation4 [shape = 's32[1]{0}', space=sflag, size = 0x4, scoped, tag = 'scoped memory for tpu_custom_call.1']
    #allocation5 [shape = 's32[1]{0}', space=sflag, size = 0x4, scoped, tag = 'scoped memory for tpu_custom_call.1']
    #allocation6 [shape = 'u8[98304]{0}', space=vmem, size = 0x18000, scoped, tag = 'input window, operand 1, single buffered']
    #allocation7 [shape = 's32[1]{0}', space=sflag, size = 0x4, scoped, tag = 'scoped memory for tpu_custom_call.1']
    #allocation8 [shape = 'u8[8192]{0}', space=vmem, size = 0x2000, scoped, tag = 'output window, operand 0, single buffered']
    %8 = vsyncpa [#allocation4], 0
    %9 = vsyncpa [#allocation7], 0
    %10 = vsyncpa [#allocation5], 0
    // Predicated region
    $region2: #{tpu_custom_call.1} parent=1 // pred_check
      _
    $region3: #{tpu_custom_call.1} parent=1 // pred_check_branch
      %12 = sbr.rel (0) target = $region5
    $region4: #{tpu_custom_call.1} parent=1 // pred_region
      %s14 = ssub.s32 3072, 3072
      %15 = vsyncadd [#allocation4], %s14
      %s16 = sshll.u32 [#allocation3], 4
      %s17 = int_to_ptr.vmem [resolvable:$true] %s16
      %22 = dma.hbm_to_vmem [thread:$0]  %s0, 3072, %s17, [#allocation4], 192, 192, 12
    $region5: #{tpu_custom_call.1} parent=1 // pred_fallthru
      _
    // Predicated region
    $region6: #{tpu_custom_call.1} parent=1 // pred_check
      _
    $region7: #{tpu_custom_call.1} parent=1 // pred_check_branch
      %24 = sbr.rel (0) target = $region9
    $region8: #{tpu_custom_call.1} parent=1 // pred_region
      %s26 = ssub.s32 3072, 3072
      %27 = vsyncadd [#allocation7], %s26
      %s28 = sshll.u32 [#allocation6], 4
      %s29 = int_to_ptr.vmem [resolvable:$true] %s28
      %34 = dma.hbm_to_vmem [thread:$0]  %s1, 3072, %s29, [#allocation7], 192, 192, 12
    $region9: #{tpu_custom_call.1} parent=1 // pred_fallthru
      _
    // Predicated region
    $region10: #{tpu_custom_call.1} parent=1 // pred_check
      _
    $region11: #{tpu_custom_call.1} parent=1 // pred_check_branch
      %36 = sbr.rel (0) target = $region13
    $region12: #{tpu_custom_call.1} parent=1 // pred_region
      _
    $region13: #{tpu_custom_call.1} parent=1 // pred_fallthru
      _
    // Predicated region
    $region14: #{tpu_custom_call.1} parent=1 // pred_check
      _
    $region15: #{tpu_custom_call.1} parent=1 // pred_check_branch
      %38 = sbr.rel (0) target = $region17
    $region16: #{tpu_custom_call.1} parent=1 // pred_region
      %39 = dma.done [#allocation4], 3072
    $region17: #{tpu_custom_call.1} parent=1 // pred_fallthru
      _
    // Predicated region
    $region18: #{tpu_custom_call.1} parent=1 // pred_check
      _
    $region19: #{tpu_custom_call.1} parent=1 // pred_check_branch
      %41 = sbr.rel (0) target = $region21
    $region20: #{tpu_custom_call.1} parent=1 // pred_region
      %42 = dma.done [#allocation7], 3072
    $region21: #{tpu_custom_call.1} parent=1 // pred_fallthru
      _
    %p44 = scmp.eq.s32.totalorder 0, 0
    // Predicated region
    $region22: #{tpu_custom_call.1} parent=1 // pred_check
      %p45 = pneg %p44
    $region23: #{tpu_custom_call.1} parent=1 // pred_check_branch
      %47 = sbr.rel (%p45) target = $region25
    $region24: #{tpu_custom_call.1} parent=1 // pred_region
      %48 = vst [vmem:[#allocation2] sm:$0xff] 0.0
      %49 = vst [vmem:[#allocation2 + $0x8] sm:$0xff] 0.0
    $region25: #{tpu_custom_call.1} parent=1 // pred_fallthru
      _
    %v50 = vld [vmem:[%s2] sm:$0x1]
    %v51 = vld [vmem:[#allocation2] sm:$0xff]
    %v52 = vld [vmem:[#allocation2 + $0x8] sm:$0xff]
    %s53 = smul.u32 0, 8
    %v54 = vld [vmem:[#allocation3] sm:$0xff]
    %v55 = vld [vmem:[#allocation3 + $0x8] sm:$0xf]
    %v56 = vld [vmem:[#allocation3 + $0xc] sm:$0xff]
    %v57 = vld [vmem:[#allocation3 + $0x14] sm:$0xf]
    %v58 = vunpack.c.l.bf16 %v54
    %v59 = vunpack.c.h.bf16 %v54
    %v60 = vunpack.c.l.bf16 %v55
    %v61 = vunpack.c.l.bf16 %v56
    %v62 = vunpack.c.h.bf16 %v56
    %v63 = vunpack.c.l.bf16 %v57
    %v64 = vpack.c.bf16 %v52, %v51
    %v65 = vld [vmem:[#allocation6] sm:$0xff]
    %v66 = vld [vmem:[#allocation6 + $0x8] sm:$0xf]
    %v67 = vld [vmem:[#allocation6 + $0xc] sm:$0xff]
    %v68 = vld [vmem:[#allocation6 + $0x14] sm:$0xf]
    %v69 = vld [vmem:[#allocation6 + $0x18] sm:$0xff]
    %v70 = vld [vmem:[#allocation6 + $0x20] sm:$0xf]
    %v71 = vld [vmem:[#allocation6 + $0x24] sm:$0xff]
    %v72 = vld [vmem:[#allocation6 + $0x2c] sm:$0xf]
    %v73 = vld [vmem:[#allocation6 + $0x30] sm:$0xff]
    %v74 = vld [vmem:[#allocation6 + $0x38] sm:$0xf]
    %v75 = vld [vmem:[#allocation6 + $0x3c] sm:$0xff]
    %v76 = vld [vmem:[#allocation6 + $0x44] sm:$0xf]
    %v77 = vld [vmem:[#allocation6 + $0x48] sm:$0xff]
    %v78 = vld [vmem:[#allocation6 + $0x50] sm:$0xf]
    %v79 = vld [vmem:[#allocation6 + $0x54] sm:$0xff]
    %v80 = vld [vmem:[#allocation6 + $0x5c] sm:$0xf]
    %v81 = vld [vmem:[#allocation6 + $0x60] sm:$0xff]
    %v82 = vld [vmem:[#allocation6 + $0x68] sm:$0xf]
    %v83 = vld [vmem:[#allocation6 + $0x6c] sm:$0xff]
    %v84 = vld [vmem:[#allocation6 + $0x74] sm:$0xf]
    %v85 = vld [vmem:[#allocation6 + $0x78] sm:$0xff]
    %v86 = vld [vmem:[#allocation6 + $0x80] sm:$0xf]
    %v87 = vld [vmem:[#allocation6 + $0x84] sm:$0xff]
    %v88 = vld [vmem:[#allocation6 + $0x8c] sm:$0xf]
    %v89 = vld [vmem:[#allocation6 + $0x90] sm:$0xff]
    %v90 = vld [vmem:[#allocation6 + $0x98] sm:$0xf]
    %v91 = vld [vmem:[#allocation6 + $0x9c] sm:$0xff]
    %v92 = vld [vmem:[#allocation6 + $0xa4] sm:$0xf]
    %v93 = vld [vmem:[#allocation6 + $0xa8] sm:$0xff]
    %v94 = vld [vmem:[#allocation6 + $0xb0] sm:$0xf]
    %v95 = vld [vmem:[#allocation6 + $0xb4] sm:$0xff]
    %v96 = vld [vmem:[#allocation6 + $0xbc] sm:$0xf]
    %v129 = vunpack.c.l.b16 %v65
    %v130 = vunpack.c.h.b16 %v65
    %v131 = vunpack.c.l.b16 %v66
    %v132 = vunpack.c.l.b16 %v67
    %v133 = vunpack.c.h.b16 %v67
    %v134 = vunpack.c.l.b16 %v68
    %v135 = vunpack.c.l.b16 %v69
    %v136 = vunpack.c.h.b16 %v69
    %v137 = vunpack.c.l.b16 %v70
    %v138 = vunpack.c.l.b16 %v71
    %v139 = vunpack.c.h.b16 %v71
    %v140 = vunpack.c.l.b16 %v72
    %v141 = vunpack.c.l.b16 %v73
    %v142 = vunpack.c.h.b16 %v73
    %v143 = vunpack.c.l.b16 %v74
    %v144 = vunpack.c.l.b16 %v75
    %v145 = vunpack.c.h.b16 %v75
    %v146 = vunpack.c.l.b16 %v76
    %v147 = vunpack.c.l.b16 %v77
    %v148 = vunpack.c.h.b16 %v77
    %v149 = vunpack.c.l.b16 %v78
    %v150 = vunpack.c.l.b16 %v79
    %v151 = vunpack.c.h.b16 %v79
    %v152 = vunpack.c.l.b16 %v80
    %v153 = vunpack.c.l.b16 %v81
    %v154 = vunpack.c.h.b16 %v81
    %v155 = vunpack.c.l.b16 %v82
    %v156 = vunpack.c.l.b16 %v83
    %v157 = vunpack.c.h.b16 %v83
    %v158 = vunpack.c.l.b16 %v84
    %v159 = vunpack.c.l.b16 %v85
    %v160 = vunpack.c.h.b16 %v85
    %v161 = vunpack.c.l.b16 %v86
    %v162 = vunpack.c.l.b16 %v87
    %v163 = vunpack.c.h.b16 %v87
    %v164 = vunpack.c.l.b16 %v88
    %v165 = vunpack.c.l.b16 %v89
    %v166 = vunpack.c.h.b16 %v89
    %v167 = vunpack.c.l.b16 %v90
    %v168 = vunpack.c.l.b16 %v91
    %v169 = vunpack.c.h.b16 %v91
    %v170 = vunpack.c.l.b16 %v92
    %v171 = vunpack.c.l.b16 %v93
    %v172 = vunpack.c.h.b16 %v93
    %v173 = vunpack.c.l.b16 %v94
    %v174 = vunpack.c.l.b16 %v95
    %v175 = vunpack.c.h.b16 %v95
    %v176 = vunpack.c.l.b16 %v96
    %v177 = vpack.c.b16 %v132, %v129
    %v178 = vpack.c.b16 %v133, %v130
    %v179 = vpack.c.b16 %v134, %v131
    %v180 = vpack.c.b16 %v138, %v135
    %v181 = vpack.c.b16 %v139, %v136
    %v182 = vpack.c.b16 %v140, %v137
    %v183 = vpack.c.b16 %v144, %v141
    %v184 = vpack.c.b16 %v145, %v142
    %v185 = vpack.c.b16 %v146, %v143
    %v186 = vpack.c.b16 %v150, %v147
    %v187 = vpack.c.b16 %v151, %v148
    %v188 = vpack.c.b16 %v152, %v149
    %v189 = vpack.c.b16 %v156, %v153
    %v190 = vpack.c.b16 %v157, %v154
    %v191 = vpack.c.b16 %v158, %v155
    %v192 = vpack.c.b16 %v162, %v159
    %v193 = vpack.c.b16 %v163, %v160
    %v194 = vpack.c.b16 %v164, %v161
    %v195 = vpack.c.b16 %v168, %v165
    %v196 = vpack.c.b16 %v169, %v166
    %v197 = vpack.c.b16 %v170, %v167
    %v198 = vpack.c.b16 %v174, %v171
    %v199 = vpack.c.b16 %v175, %v172
    %v200 = vpack.c.b16 %v176, %v173
    %225 = vmatprep.subr.bf16.mxu0 %v199
    %226 = vmatpush1.bf16.msra.mxu0 %v198
    %227 = vmatprep.subr.bf16.mxu0 %v196
    %228 = vmatpush1.bf16.msra.mxu0 %v195
    %229 = vmatprep.subr.bf16.mxu0 %v193
    %230 = vmatpush1.bf16.msra.mxu0 %v192
    %231 = vmatprep.subr.bf16.mxu0 %v190
    %232 = vmatpush1.bf16.msra.mxu0 %v189
    %233 = vmatprep.subr.bf16.mxu0 %v187
    %234 = vmatpush1.bf16.msra.mxu0 %v186
    %235 = vmatprep.subr.bf16.mxu0 %v184
    %236 = vmatpush1.bf16.msra.mxu0 %v183
    %237 = vmatprep.subr.bf16.mxu0 %v181
    %238 = vmatpush1.bf16.msra.mxu0 %v180
    %239 = vmatprep.subr.bf16.mxu0 %v178
    %240 = vmatpush1.bf16.msra.mxu0 %v177
    %241 = vmatprep.subr.bf16.mxu0 0
    %242 = vmatpush2.bf16.msra.mxu0 0
    %243 = vmatprep.subr.bf16.mxu0 0
    %244 = vmatpush2.bf16.msra.mxu0 0
    %245 = vmatprep.subr.bf16.mxu0 0
    %246 = vmatpush2.bf16.msra.mxu0 0
    %247 = vmatprep.subr.bf16.mxu0 0
    %248 = vmatpush2.bf16.msra.mxu0 0
    %249 = vmatprep.subr.bf16.mxu0 0
    %250 = vmatpush2.bf16.msra.mxu0 0
    %251 = vmatprep.subr.bf16.mxu0 0
    %252 = vmatpush2.bf16.msra.mxu0 0
    %253 = vmatprep.subr.bf16.mxu0 0
    %254 = vmatpush2.bf16.msra.mxu0 0
    %255 = vmatprep.subr.bf16.mxu0 0
    %256 = vmatpush2.bf16.msra.mxu0 0
    %257 = vmatprep.mubr.bf16.mxu0 0
    %258 = vmatmul.mubr.bf16.gmra.mxu0 %v64
    %v259 = vpop.f32.mrf.mxu0
    %v260 = vadd.f32 0.0, %v259
    %v261 = vpop.f32.mrf.mxu0
    %v262 = vadd.f32 0.0, %v261
    %v263 = vpop.f32.mrf.mxu0
    %v264 = vadd.f32 0.0, %v263
    %v265 = vpop.f32.mrf.mxu0
    %v266 = vadd.f32 0.0, %v265
    %267 = vdwg.mxu0
    %268 = vmatprep.subr.bf16.mxu0 0
    %269 = vmatpush1.bf16.msra.mxu0 %v200
    %270 = vmatprep.subr.bf16.mxu0 0
    %271 = vmatpush1.bf16.msra.mxu0 %v197
    %272 = vmatprep.subr.bf16.mxu0 0
    %273 = vmatpush1.bf16.msra.mxu0 %v194
    %274 = vmatprep.subr.bf16.mxu0 0
    %275 = vmatpush1.bf16.msra.mxu0 %v191
    %276 = vmatprep.subr.bf16.mxu0 0
    %277 = vmatpush1.bf16.msra.mxu0 %v188
    %278 = vmatprep.subr.bf16.mxu0 0
    %279 = vmatpush1.bf16.msra.mxu0 %v185
    %280 = vmatprep.subr.bf16.mxu0 0
    %281 = vmatpush1.bf16.msra.mxu0 %v182
    %282 = vmatprep.subr.bf16.mxu0 0
    %283 = vmatpush1.bf16.msra.mxu0 %v179
    %284 = vmatprep.subr.bf16.mxu0 0
    %285 = vmatpush2.bf16.msra.mxu0 0
    %286 = vmatprep.subr.bf16.mxu0 0
    %287 = vmatpush2.bf16.msra.mxu0 0
    %288 = vmatprep.subr.bf16.mxu0 0
    %289 = vmatpush2.bf16.msra.mxu0 0
    %290 = vmatprep.subr.bf16.mxu0 0
    %291 = vmatpush2.bf16.msra.mxu0 0
    %292 = vmatprep.subr.bf16.mxu0 0
    %293 = vmatpush2.bf16.msra.mxu0 0
    %294 = vmatprep.subr.bf16.mxu0 0
    %295 = vmatpush2.bf16.msra.mxu0 0
    %296 = vmatprep.subr.bf16.mxu0 0
    %297 = vmatpush2.bf16.msra.mxu0 0
    %298 = vmatprep.subr.bf16.mxu0 0
    %299 = vmatpush2.bf16.msra.mxu0 0
    %300 = vmatprep.mubr.bf16.mxu0 0
    %301 = vmatmul.mubr.bf16.gmra.mxu0 %v64
    %v302 = vpop.f32.mrf.mxu0
    %v303 = vadd.f32 0.0, %v302
    %v304 = vpop.f32.mrf.mxu0
    %v305 = vpop.f32.mrf.mxu0
    %v306 = vadd.f32 0.0, %v305
    %v307 = vpop.f32.mrf.mxu0
    %308 = vdwg.mxu0
    %v309 = vadd.f32 %v58, %v260
    %v310 = vadd.f32 %v59, %v262
    %v311 = vadd.f32 %v61, %v264
    %v312 = vadd.f32 %v62, %v266
    %v313 = vxor.u32 %v309, 2147483648
    %v314 = vxor.u32 %v310, 2147483648
    %v315 = vxor.u32 %v311, 2147483648
    %v316 = vxor.u32 %v312, 2147483648
    %v317 = vmul.f32 %v313, 1.442695
    %v318 = vpow.pop %v317
    %v319 = vmul.f32 %v314, 1.442695
    %v320 = vpow.pop %v319
    %v321 = vmul.f32 %v315, 1.442695
    %v322 = vpow.pop %v321
    %v323 = vmul.f32 %v316, 1.442695
    %v324 = vpow.pop %v323
    %v325 = vadd.f32 %v318, 1.0
    %v326 = vadd.f32 %v320, 1.0
    %v327 = vadd.f32 %v322, 1.0
    %v328 = vadd.f32 %v324, 1.0
    %v329 = vrcp.pop %v325
    %v330 = vmul.f32 1.0, %v329
    %v331 = vrcp.pop %v326
    %v332 = vmul.f32 1.0, %v331
    %v333 = vrcp.pop %v327
    %v334 = vmul.f32 1.0, %v333
    %v335 = vrcp.pop %v328
    %v336 = vmul.f32 1.0, %v335
    %v338 = vlaneseq
    %v339 = vshrl.u32 %v338, 7
    %v340 = vsub.s32 0, %v339
    %v341 = vrot.slane %v50, %v340
    %v343 = vadd.f32 %v303, %v341
    %v344 = vadd.f32 %v306, %v341
    %v345 = vmul.f32 %v330, %v343
    %v346 = vmul.f32 %v334, %v344
    %v347 = vadd.f32 %v60, %v345
    %v348 = vadd.f32 %v63, %v346
    %v349 = vtanh.pop %v347
    %v350 = vtanh.pop %v348
    %v351 = vsub.f32 %v51, %v349
    %v352 = vsub.f32 %v52, %v350
    %v353 = vmul.f32 %v332, %v351
    %v354 = vmul.f32 %v336, %v352
    %v355 = vadd.f32 %v349, %v353
    %v356 = vadd.f32 %v350, %v354
    %p357 = scmp.lt.s32.totalorder %s53, 8
    %s358 = scalar_select %p357, 1, 0
    %v359 = vstv %s358
    %vm360 = vcmp.eq.s32.totalorder %v359, 1
    %v361 = vsel %vm360, %v355, %v51
    %v362 = vsel %vm360, %v356, %v52
    %s363 = sadd.s32 %s53, 1
    %s364 = scalar_lea.vmem [#allocation3], 24
    %v365 = vld [vmem:[%s364] sm:$0xff]
    %v366 = vld [vmem:[%s364 + $0x8] sm:$0xf]
    %v367 = vld [vmem:[%s364 + $0xc] sm:$0xff]
    %v368 = vld [vmem:[%s364 + $0x14] sm:$0xf]
    %v369 = vunpack.c.l.bf16 %v365
    %v370 = vunpack.c.h.bf16 %v365
    %v371 = vunpack.c.l.bf16 %v366
    %v372 = vunpack.c.l.bf16 %v367
    %v373 = vunpack.c.h.bf16 %v367
    %v374 = vunpack.c.l.bf16 %v368
    %v375 = vpack.c.bf16 %v362, %v361
    %376 = vmatprep.subr.bf16.mxu0 %v199
    %377 = vmatpush1.bf16.msra.mxu0 %v198
    %378 = vmatprep.subr.bf16.mxu0 %v196
    %379 = vmatpush1.bf16.msra.mxu0 %v195
    %380 = vmatprep.subr.bf16.mxu0 %v193
    %381 = vmatpush1.bf16.msra.mxu0 %v192
    %382 = vmatprep.subr.bf16.mxu0 %v190
    %383 = vmatpush1.bf16.msra.mxu0 %v189
    %384 = vmatprep.subr.bf16.mxu0 %v187
    %385 = vmatpush1.bf16.msra.mxu0 %v186
    %386 = vmatprep.subr.bf16.mxu0 %v184
    %387 = vmatpush1.bf16.msra.mxu0 %v183
    %388 = vmatprep.subr.bf16.mxu0 %v181
    %389 = vmatpush1.bf16.msra.mxu0 %v180
    %390 = vmatprep.subr.bf16.mxu0 %v178
    %391 = vmatpush1.bf16.msra.mxu0 %v177
    %392 = vmatprep.subr.bf16.mxu0 0
    %393 = vmatpush2.bf16.msra.mxu0 0
    %394 = vmatprep.subr.bf16.mxu0 0
    %395 = vmatpush2.bf16.msra.mxu0 0
    %396 = vmatprep.subr.bf16.mxu0 0
    %397 = vmatpush2.bf16.msra.mxu0 0
    %398 = vmatprep.subr.bf16.mxu0 0
    %399 = vmatpush2.bf16.msra.mxu0 0
    %400 = vmatprep.subr.bf16.mxu0 0
    %401 = vmatpush2.bf16.msra.mxu0 0
    %402 = vmatprep.subr.bf16.mxu0 0
    %403 = vmatpush2.bf16.msra.mxu0 0
    %404 = vmatprep.subr.bf16.mxu0 0
    %405 = vmatpush2.bf16.msra.mxu0 0
    %406 = vmatprep.subr.bf16.mxu0 0
    %407 = vmatpush2.bf16.msra.mxu0 0
    %408 = vmatprep.mubr.bf16.mxu0 0
    %409 = vmatmul.mubr.bf16.gmra.mxu0 %v375
    %v410 = vpop.f32.mrf.mxu0
    %v411 = vadd.f32 0.0, %v410
    %v412 = vpop.f32.mrf.mxu0
    %v413 = vadd.f32 0.0, %v412
    %v414 = vpop.f32.mrf.mxu0
    %v415 = vadd.f32 0.0, %v414
    %v416 = vpop.f32.mrf.mxu0
    %v417 = vadd.f32 0.0, %v416
    %418 = vdwg.mxu0
    %419 = vmatprep.subr.bf16.mxu0 0
    %420 = vmatpush1.bf16.msra.mxu0 %v200
    %421 = vmatprep.subr.bf16.mxu0 0
    %422 = vmatpush1.bf16.msra.mxu0 %v197
    %423 = vmatprep.subr.bf16.mxu0 0
    %424 = vmatpush1.bf16.msra.mxu0 %v194
    %425 = vmatprep.subr.bf16.mxu0 0
    %426 = vmatpush1.bf16.msra.mxu0 %v191
    %427 = vmatprep.subr.bf16.mxu0 0
    %428 = vmatpush1.bf16.msra.mxu0 %v188
    %429 = vmatprep.subr.bf16.mxu0 0
    %430 = vmatpush1.bf16.msra.mxu0 %v185
    %431 = vmatprep.subr.bf16.mxu0 0
    %432 = vmatpush1.bf16.msra.mxu0 %v182
    %433 = vmatprep.subr.bf16.mxu0 0
    %434 = vmatpush1.bf16.msra.mxu0 %v179
    %435 = vmatprep.subr.bf16.mxu0 0
    %436 = vmatpush2.bf16.msra.mxu0 0
    %437 = vmatprep.subr.bf16.mxu0 0
    %438 = vmatpush2.bf16.msra.mxu0 0
    %439 = vmatprep.subr.bf16.mxu0 0
    %440 = vmatpush2.bf16.msra.mxu0 0
    %441 = vmatprep.subr.bf16.mxu0 0
    %442 = vmatpush2.bf16.msra.mxu0 0
    %443 = vmatprep.subr.bf16.mxu0 0
    %444 = vmatpush2.bf16.msra.mxu0 0
    %445 = vmatprep.subr.bf16.mxu0 0
    %446 = vmatpush2.bf16.msra.mxu0 0
    %447 = vmatprep.subr.bf16.mxu0 0
    %448 = vmatpush2.bf16.msra.mxu0 0
    %449 = vmatprep.subr.bf16.mxu0 0
    %450 = vmatpush2.bf16.msra.mxu0 0
    %451 = vmatprep.mubr.bf16.mxu0 0
    %452 = vmatmul.mubr.bf16.gmra.mxu0 %v375
    %v453 = vpop.f32.mrf.mxu0
    %v454 = vadd.f32 0.0, %v453
    %v455 = vpop.f32.mrf.mxu0
    %v456 = vpop.f32.mrf.mxu0
    %v457 = vadd.f32 0.0, %v456
    %v458 = vpop.f32.mrf.mxu0
    %459 = vdwg.mxu0
    %v460 = vadd.f32 %v369, %v411
    %v461 = vadd.f32 %v370, %v413
    %v462 = vadd.f32 %v372, %v415
    %v463 = vadd.f32 %v373, %v417
    %v464 = vxor.u32 %v460, 2147483648
    %v465 = vxor.u32 %v461, 2147483648
    %v466 = vxor.u32 %v462, 2147483648
    %v467 = vxor.u32 %v463, 2147483648
    %v468 = vmul.f32 %v464, 1.442695
    %v469 = vpow.pop %v468
    %v470 = vmul.f32 %v465, 1.442695
    %v471 = vpow.pop %v470
    %v472 = vmul.f32 %v466, 1.442695
    %v473 = vpow.pop %v472
    %v474 = vmul.f32 %v467, 1.442695
    %v475 = vpow.pop %v474
    %v476 = vadd.f32 %v469, 1.0
    %v477 = vadd.f32 %v471, 1.0
    %v478 = vadd.f32 %v473, 1.0
    %v479 = vadd.f32 %v475, 1.0
    %v480 = vrcp.pop %v476
    %v481 = vmul.f32 1.0, %v480
    %v482 = vrcp.pop %v477
    %v483 = vmul.f32 1.0, %v482
    %v484 = vrcp.pop %v478
    %v485 = vmul.f32 1.0, %v484
    %v486 = vrcp.pop %v479
    %v487 = vmul.f32 1.0, %v486
    %v488 = vadd.f32 %v454, %v341
    %v489 = vadd.f32 %v457, %v341
    %v490 = vmul.f32 %v481, %v488
    %v491 = vmul.f32 %v485, %v489
    %v492 = vadd.f32 %v371, %v490
    %v493 = vadd.f32 %v374, %v491
    %v494 = vtanh.pop %v492
    %v495 = vtanh.pop %v493
    %v496 = vsub.f32 %v361, %v494
    %v497 = vsub.f32 %v362, %v495
    %v498 = vmul.f32 %v483, %v496
    %v499 = vmul.f32 %v487, %v497
    %v500 = vadd.f32 %v494, %v498
    %v501 = vadd.f32 %v495, %v499
    %p502 = scmp.lt.s32.totalorder %s363, 8
    %s503 = scalar_select %p502, 1, 0
    %v504 = vstv %s503
    %vm505 = vcmp.eq.s32.totalorder %v504, 1
    %v506 = vsel %vm505, %v500, %v361
    %v507 = vsel %vm505, %v501, %v362
    %s508 = sadd.s32 %s53, 2
    %s509 = scalar_lea.vmem [#allocation3], 48
    %v510 = vld [vmem:[%s509] sm:$0xff]
    %v511 = vld [vmem:[%s509 + $0x8] sm:$0xf]
    %v512 = vld [vmem:[%s509 + $0xc] sm:$0xff]
    %v513 = vld [vmem:[%s509 + $0x14] sm:$0xf]
    %v514 = vunpack.c.l.bf16 %v510
    %v515 = vunpack.c.h.bf16 %v510
    %v516 = vunpack.c.l.bf16 %v511
    %v517 = vunpack.c.l.bf16 %v512
    %v518 = vunpack.c.h.bf16 %v512
    %v519 = vunpack.c.l.bf16 %v513
    %v520 = vpack.c.bf16 %v507, %v506
    %521 = vmatprep.subr.bf16.mxu0 %v199
    %522 = vmatpush1.bf16.msra.mxu0 %v198
    %523 = vmatprep.subr.bf16.mxu0 %v196
    %524 = vmatpush1.bf16.msra.mxu0 %v195
    %525 = vmatprep.subr.bf16.mxu0 %v193
    %526 = vmatpush1.bf16.msra.mxu0 %v192
    %527 = vmatprep.subr.bf16.mxu0 %v190
    %528 = vmatpush1.bf16.msra.mxu0 %v189
    %529 = vmatprep.subr.bf16.mxu0 %v187
    %530 = vmatpush1.bf16.msra.mxu0 %v186
    %531 = vmatprep.subr.bf16.mxu0 %v184
    %532 = vmatpush1.bf16.msra.mxu0 %v183
    %533 = vmatprep.subr.bf16.mxu0 %v181
    %534 = vmatpush1.bf16.msra.mxu0 %v180
    %535 = vmatprep.subr.bf16.mxu0 %v178
    %536 = vmatpush1.bf16.msra.mxu0 %v177
    %537 = vmatprep.subr.bf16.mxu0 0
    %538 = vmatpush2.bf16.msra.mxu0 0
    %539 = vmatprep.subr.bf16.mxu0 0
    %540 = vmatpush2.bf16.msra.mxu0 0
    %541 = vmatprep.subr.bf16.mxu0 0
    %542 = vmatpush2.bf16.msra.mxu0 0
    %543 = vmatprep.subr.bf16.mxu0 0
    %544 = vmatpush2.bf16.msra.mxu0 0
    %545 = vmatprep.subr.bf16.mxu0 0
    %546 = vmatpush2.bf16.msra.mxu0 0
    %547 = vmatprep.subr.bf16.mxu0 0
    %548 = vmatpush2.bf16.msra.mxu0 0
    %549 = vmatprep.subr.bf16.mxu0 0
    %550 = vmatpush2.bf16.msra.mxu0 0
    %551 = vmatprep.subr.bf16.mxu0 0
    %552 = vmatpush2.bf16.msra.mxu0 0
    %553 = vmatprep.mubr.bf16.mxu0 0
    %554 = vmatmul.mubr.bf16.gmra.mxu0 %v520
    %v555 = vpop.f32.mrf.mxu0
    %v556 = vadd.f32 0.0, %v555
    %v557 = vpop.f32.mrf.mxu0
    %v558 = vadd.f32 0.0, %v557
    %v559 = vpop.f32.mrf.mxu0
    %v560 = vadd.f32 0.0, %v559
    %v561 = vpop.f32.mrf.mxu0
    %v562 = vadd.f32 0.0, %v561
    %563 = vdwg.mxu0
    %564 = vmatprep.subr.bf16.mxu0 0
    %565 = vmatpush1.bf16.msra.mxu0 %v200
    %566 = vmatprep.subr.bf16.mxu0 0
    %567 = vmatpush1.bf16.msra.mxu0 %v197
    %568 = vmatprep.subr.bf16.mxu0 0
    %569 = vmatpush1.bf16.msra.mxu0 %v194
    %570 = vmatprep.subr.bf16.mxu0 0
    %571 = vmatpush1.bf16.msra.mxu0 %v191
    %572 = vmatprep.subr.bf16.mxu0 0
    %573 = vmatpush1.bf16.msra.mxu0 %v188
    %574 = vmatprep.subr.bf16.mxu0 0
    %575 = vmatpush1.bf16.msra.mxu0 %v185
    %576 = vmatprep.subr.bf16.mxu0 0
    %577 = vmatpush1.bf16.msra.mxu0 %v182
    %578 = vmatprep.subr.bf16.mxu0 0
    %579 = vmatpush1.bf16.msra.mxu0 %v179
    %580 = vmatprep.subr.bf16.mxu0 0
    %581 = vmatpush2.bf16.msra.mxu0 0
    %582 = vmatprep.subr.bf16.mxu0 0
    %583 = vmatpush2.bf16.msra.mxu0 0
    %584 = vmatprep.subr.bf16.mxu0 0
    %585 = vmatpush2.bf16.msra.mxu0 0
    %586 = vmatprep.subr.bf16.mxu0 0
    %587 = vmatpush2.bf16.msra.mxu0 0
    %588 = vmatprep.subr.bf16.mxu0 0
    %589 = vmatpush2.bf16.msra.mxu0 0
    %590 = vmatprep.subr.bf16.mxu0 0
    %591 = vmatpush2.bf16.msra.mxu0 0
    %592 = vmatprep.subr.bf16.mxu0 0
    %593 = vmatpush2.bf16.msra.mxu0 0
    %594 = vmatprep.subr.bf16.mxu0 0
    %595 = vmatpush2.bf16.msra.mxu0 0
    %596 = vmatprep.mubr.bf16.mxu0 0
    %597 = vmatmul.mubr.bf16.gmra.mxu0 %v520
    %v598 = vpop.f32.mrf.mxu0
    %v599 = vadd.f32 0.0, %v598
    %v600 = vpop.f32.mrf.mxu0
    %v601 = vpop.f32.mrf.mxu0
    %v602 = vadd.f32 0.0, %v601
    %v603 = vpop.f32.mrf.mxu0
    %604 = vdwg.mxu0
    %v605 = vadd.f32 %v514, %v556
    %v606 = vadd.f32 %v515, %v558
    %v607 = vadd.f32 %v517, %v560
    %v608 = vadd.f32 %v518, %v562
    %v609 = vxor.u32 %v605, 2147483648
    %v610 = vxor.u32 %v606, 2147483648
    %v611 = vxor.u32 %v607, 2147483648
    %v612 = vxor.u32 %v608, 2147483648
    %v613 = vmul.f32 %v609, 1.442695
    %v614 = vpow.pop %v613
    %v615 = vmul.f32 %v610, 1.442695
    %v616 = vpow.pop %v615
    %v617 = vmul.f32 %v611, 1.442695
    %v618 = vpow.pop %v617
    %v619 = vmul.f32 %v612, 1.442695
    %v620 = vpow.pop %v619
    %v621 = vadd.f32 %v614, 1.0
    %v622 = vadd.f32 %v616, 1.0
    %v623 = vadd.f32 %v618, 1.0
    %v624 = vadd.f32 %v620, 1.0
    %v625 = vrcp.pop %v621
    %v626 = vmul.f32 1.0, %v625
    %v627 = vrcp.pop %v622
    %v628 = vmul.f32 1.0, %v627
    %v629 = vrcp.pop %v623
    %v630 = vmul.f32 1.0, %v629
    %v631 = vrcp.pop %v624
    %v632 = vmul.f32 1.0, %v631
    %v633 = vadd.f32 %v599, %v341
    %v634 = vadd.f32 %v602, %v341
    %v635 = vmul.f32 %v626, %v633
    %v636 = vmul.f32 %v630, %v634
    %v637 = vadd.f32 %v516, %v635
    %v638 = vadd.f32 %v519, %v636
    %v639 = vtanh.pop %v637
    %v640 = vtanh.pop %v638
    %v641 = vsub.f32 %v506, %v639
    %v642 = vsub.f32 %v507, %v640
    %v643 = vmul.f32 %v628, %v641
    %v644 = vmul.f32 %v632, %v642
    %v645 = vadd.f32 %v639, %v643
    %v646 = vadd.f32 %v640, %v644
    %p647 = scmp.lt.s32.totalorder %s508, 8
    %s648 = scalar_select %p647, 1, 0
    %v649 = vstv %s648
    %vm650 = vcmp.eq.s32.totalorder %v649, 1
    %v651 = vsel %vm650, %v645, %v506
    %v652 = vsel %vm650, %v646, %v507
    %s653 = sadd.s32 %s53, 3
    %s654 = scalar_lea.vmem [#allocation3], 72
    %v655 = vld [vmem:[%s654] sm:$0xff]
    %v656 = vld [vmem:[%s654 + $0x8] sm:$0xf]
    %v657 = vld [vmem:[%s654 + $0xc] sm:$0xff]
    %v658 = vld [vmem:[%s654 + $0x14] sm:$0xf]
    %v659 = vunpack.c.l.bf16 %v655
    %v660 = vunpack.c.h.bf16 %v655
    %v661 = vunpack.c.l.bf16 %v656
    %v662 = vunpack.c.l.bf16 %v657
    %v663 = vunpack.c.h.bf16 %v657
    %v664 = vunpack.c.l.bf16 %v658
    %v665 = vpack.c.bf16 %v652, %v651
    %666 = vmatprep.subr.bf16.mxu0 %v199
    %667 = vmatpush1.bf16.msra.mxu0 %v198
    %668 = vmatprep.subr.bf16.mxu0 %v196
    %669 = vmatpush1.bf16.msra.mxu0 %v195
    %670 = vmatprep.subr.bf16.mxu0 %v193
    %671 = vmatpush1.bf16.msra.mxu0 %v192
    %672 = vmatprep.subr.bf16.mxu0 %v190
    %673 = vmatpush1.bf16.msra.mxu0 %v189
    %674 = vmatprep.subr.bf16.mxu0 %v187
    %675 = vmatpush1.bf16.msra.mxu0 %v186
    %676 = vmatprep.subr.bf16.mxu0 %v184
    %677 = vmatpush1.bf16.msra.mxu0 %v183
    %678 = vmatprep.subr.bf16.mxu0 %v181
    %679 = vmatpush1.bf16.msra.mxu0 %v180
    %680 = vmatprep.subr.bf16.mxu0 %v178
    %681 = vmatpush1.bf16.msra.mxu0 %v177
    %682 = vmatprep.subr.bf16.mxu0 0
    %683 = vmatpush2.bf16.msra.mxu0 0
    %684 = vmatprep.subr.bf16.mxu0 0
    %685 = vmatpush2.bf16.msra.mxu0 0
    %686 = vmatprep.subr.bf16.mxu0 0
    %687 = vmatpush2.bf16.msra.mxu0 0
    %688 = vmatprep.subr.bf16.mxu0 0
    %689 = vmatpush2.bf16.msra.mxu0 0
    %690 = vmatprep.subr.bf16.mxu0 0
    %691 = vmatpush2.bf16.msra.mxu0 0
    %692 = vmatprep.subr.bf16.mxu0 0
    %693 = vmatpush2.bf16.msra.mxu0 0
    %694 = vmatprep.subr.bf16.mxu0 0
    %695 = vmatpush2.bf16.msra.mxu0 0
    %696 = vmatprep.subr.bf16.mxu0 0
    %697 = vmatpush2.bf16.msra.mxu0 0
    %698 = vmatprep.mubr.bf16.mxu0 0
    %699 = vmatmul.mubr.bf16.gmra.mxu0 %v665
    %v700 = vpop.f32.mrf.mxu0
    %v701 = vadd.f32 0.0, %v700
    %v702 = vpop.f32.mrf.mxu0
    %v703 = vadd.f32 0.0, %v702
    %v704 = vpop.f32.mrf.mxu0
    %v705 = vadd.f32 0.0, %v704
    %v706 = vpop.f32.mrf.mxu0
    %v707 = vadd.f32 0.0, %v706
    %708 = vdwg.mxu0
    %709 = vmatprep.subr.bf16.mxu0 0
    %710 = vmatpush1.bf16.msra.mxu0 %v200
    %711 = vmatprep.subr.bf16.mxu0 0
    %712 = vmatpush1.bf16.msra.mxu0 %v197
    %713 = vmatprep.subr.bf16.mxu0 0
    %714 = vmatpush1.bf16.msra.mxu0 %v194
    %715 = vmatprep.subr.bf16.mxu0 0
    %716 = vmatpush1.bf16.msra.mxu0 %v191
    %717 = vmatprep.subr.bf16.mxu0 0
    %718 = vmatpush1.bf16.msra.mxu0 %v188
    %719 = vmatprep.subr.bf16.mxu0 0
    %720 = vmatpush1.bf16.msra.mxu0 %v185
    %721 = vmatprep.subr.bf16.mxu0 0
    %722 = vmatpush1.bf16.msra.mxu0 %v182
    %723 = vmatprep.subr.bf16.mxu0 0
    %724 = vmatpush1.bf16.msra.mxu0 %v179
    %725 = vmatprep.subr.bf16.mxu0 0
    %726 = vmatpush2.bf16.msra.mxu0 0
    %727 = vmatprep.subr.bf16.mxu0 0
    %728 = vmatpush2.bf16.msra.mxu0 0
    %729 = vmatprep.subr.bf16.mxu0 0
    %730 = vmatpush2.bf16.msra.mxu0 0
    %731 = vmatprep.subr.bf16.mxu0 0
    %732 = vmatpush2.bf16.msra.mxu0 0
    %733 = vmatprep.subr.bf16.mxu0 0
    %734 = vmatpush2.bf16.msra.mxu0 0
    %735 = vmatprep.subr.bf16.mxu0 0
    %736 = vmatpush2.bf16.msra.mxu0 0
    %737 = vmatprep.subr.bf16.mxu0 0
    %738 = vmatpush2.bf16.msra.mxu0 0
    %739 = vmatprep.subr.bf16.mxu0 0
    %740 = vmatpush2.bf16.msra.mxu0 0
    %741 = vmatprep.mubr.bf16.mxu0 0
    %742 = vmatmul.mubr.bf16.gmra.mxu0 %v665
    %v743 = vpop.f32.mrf.mxu0
    %v744 = vadd.f32 0.0, %v743
    %v745 = vpop.f32.mrf.mxu0
    %v746 = vpop.f32.mrf.mxu0
    %v747 = vadd.f32 0.0, %v746
    %v748 = vpop.f32.mrf.mxu0
    %749 = vdwg.mxu0
    %v750 = vadd.f32 %v659, %v701
    %v751 = vadd.f32 %v660, %v703
    %v752 = vadd.f32 %v662, %v705
    %v753 = vadd.f32 %v663, %v707
    %v754 = vxor.u32 %v750, 2147483648
    %v755 = vxor.u32 %v751, 2147483648
    %v756 = vxor.u32 %v752, 2147483648
    %v757 = vxor.u32 %v753, 2147483648
    %v758 = vmul.f32 %v754, 1.442695
    %v759 = vpow.pop %v758
    %v760 = vmul.f32 %v755, 1.442695
    %v761 = vpow.pop %v760
    %v762 = vmul.f32 %v756, 1.442695
    %v763 = vpow.pop %v762
    %v764 = vmul.f32 %v757, 1.442695
    %v765 = vpow.pop %v764
    %v766 = vadd.f32 %v759, 1.0
    %v767 = vadd.f32 %v761, 1.0
    %v768 = vadd.f32 %v763, 1.0
    %v769 = vadd.f32 %v765, 1.0
    %v770 = vrcp.pop %v766
    %v771 = vmul.f32 1.0, %v770
    %v772 = vrcp.pop %v767
    %v773 = vmul.f32 1.0, %v772
    %v774 = vrcp.pop %v768
    %v775 = vmul.f32 1.0, %v774
    %v776 = vrcp.pop %v769
    %v777 = vmul.f32 1.0, %v776
    %v778 = vadd.f32 %v744, %v341
    %v779 = vadd.f32 %v747, %v341
    %v780 = vmul.f32 %v771, %v778
    %v781 = vmul.f32 %v775, %v779
    %v782 = vadd.f32 %v661, %v780
    %v783 = vadd.f32 %v664, %v781
    %v784 = vtanh.pop %v782
    %v785 = vtanh.pop %v783
    %v786 = vsub.f32 %v651, %v784
    %v787 = vsub.f32 %v652, %v785
    %v788 = vmul.f32 %v773, %v786
    %v789 = vmul.f32 %v777, %v787
    %v790 = vadd.f32 %v784, %v788
    %v791 = vadd.f32 %v785, %v789
    %p792 = scmp.lt.s32.totalorder %s653, 8
    %s793 = scalar_select %p792, 1, 0
    %v794 = vstv %s793
    %vm795 = vcmp.eq.s32.totalorder %v794, 1
    %v796 = vsel %vm795, %v790, %v651
    %v797 = vsel %vm795, %v791, %v652
    %s798 = sadd.s32 %s53, 4
    %s799 = scalar_lea.vmem [#allocation3], 96
    %v800 = vld [vmem:[%s799] sm:$0xff]
    %v801 = vld [vmem:[%s799 + $0x8] sm:$0xf]
    %v802 = vld [vmem:[%s799 + $0xc] sm:$0xff]
    %v803 = vld [vmem:[%s799 + $0x14] sm:$0xf]
    %v804 = vunpack.c.l.bf16 %v800
    %v805 = vunpack.c.h.bf16 %v800
    %v806 = vunpack.c.l.bf16 %v801
    %v807 = vunpack.c.l.bf16 %v802
    %v808 = vunpack.c.h.bf16 %v802
    %v809 = vunpack.c.l.bf16 %v803
    %v810 = vpack.c.bf16 %v797, %v796
    %811 = vmatprep.subr.bf16.mxu0 %v199
    %812 = vmatpush1.bf16.msra.mxu0 %v198
    %813 = vmatprep.subr.bf16.mxu0 %v196
    %814 = vmatpush1.bf16.msra.mxu0 %v195
    %815 = vmatprep.subr.bf16.mxu0 %v193
    %816 = vmatpush1.bf16.msra.mxu0 %v192
    %817 = vmatprep.subr.bf16.mxu0 %v190
    %818 = vmatpush1.bf16.msra.mxu0 %v189
    %819 = vmatprep.subr.bf16.mxu0 %v187
    %820 = vmatpush1.bf16.msra.mxu0 %v186
    %821 = vmatprep.subr.bf16.mxu0 %v184
    %822 = vmatpush1.bf16.msra.mxu0 %v183
    %823 = vmatprep.subr.bf16.mxu0 %v181
    %824 = vmatpush1.bf16.msra.mxu0 %v180
    %825 = vmatprep.subr.bf16.mxu0 %v178
    %826 = vmatpush1.bf16.msra.mxu0 %v177
    %827 = vmatprep.subr.bf16.mxu0 0
    %828 = vmatpush2.bf16.msra.mxu0 0
    %829 = vmatprep.subr.bf16.mxu0 0
    %830 = vmatpush2.bf16.msra.mxu0 0
    %831 = vmatprep.subr.bf16.mxu0 0
    %832 = vmatpush2.bf16.msra.mxu0 0
    %833 = vmatprep.subr.bf16.mxu0 0
    %834 = vmatpush2.bf16.msra.mxu0 0
    %835 = vmatprep.subr.bf16.mxu0 0
    %836 = vmatpush2.bf16.msra.mxu0 0
    %837 = vmatprep.subr.bf16.mxu0 0
    %838 = vmatpush2.bf16.msra.mxu0 0
    %839 = vmatprep.subr.bf16.mxu0 0
    %840 = vmatpush2.bf16.msra.mxu0 0
    %841 = vmatprep.subr.bf16.mxu0 0
    %842 = vmatpush2.bf16.msra.mxu0 0
    %843 = vmatprep.mubr.bf16.mxu0 0
    %844 = vmatmul.mubr.bf16.gmra.mxu0 %v810
    %v845 = vpop.f32.mrf.mxu0
    %v846 = vadd.f32 0.0, %v845
    %v847 = vpop.f32.mrf.mxu0
    %v848 = vadd.f32 0.0, %v847
    %v849 = vpop.f32.mrf.mxu0
    %v850 = vadd.f32 0.0, %v849
    %v851 = vpop.f32.mrf.mxu0
    %v852 = vadd.f32 0.0, %v851
    %853 = vdwg.mxu0
    %854 = vmatprep.subr.bf16.mxu0 0
    %855 = vmatpush1.bf16.msra.mxu0 %v200
    %856 = vmatprep.subr.bf16.mxu0 0
    %857 = vmatpush1.bf16.msra.mxu0 %v197
    %858 = vmatprep.subr.bf16.mxu0 0
    %859 = vmatpush1.bf16.msra.mxu0 %v194
    %860 = vmatprep.subr.bf16.mxu0 0
    %861 = vmatpush1.bf16.msra.mxu0 %v191
    %862 = vmatprep.subr.bf16.mxu0 0
    %863 = vmatpush1.bf16.msra.mxu0 %v188
    %864 = vmatprep.subr.bf16.mxu0 0
    %865 = vmatpush1.bf16.msra.mxu0 %v185
    %866 = vmatprep.subr.bf16.mxu0 0
    %867 = vmatpush1.bf16.msra.mxu0 %v182
    %868 = vmatprep.subr.bf16.mxu0 0
    %869 = vmatpush1.bf16.msra.mxu0 %v179
    %870 = vmatprep.subr.bf16.mxu0 0
    %871 = vmatpush2.bf16.msra.mxu0 0
    %872 = vmatprep.subr.bf16.mxu0 0
    %873 = vmatpush2.bf16.msra.mxu0 0
    %874 = vmatprep.subr.bf16.mxu0 0
    %875 = vmatpush2.bf16.msra.mxu0 0
    %876 = vmatprep.subr.bf16.mxu0 0
    %877 = vmatpush2.bf16.msra.mxu0 0
    %878 = vmatprep.subr.bf16.mxu0 0
    %879 = vmatpush2.bf16.msra.mxu0 0
    %880 = vmatprep.subr.bf16.mxu0 0
    %881 = vmatpush2.bf16.msra.mxu0 0
    %882 = vmatprep.subr.bf16.mxu0 0
    %883 = vmatpush2.bf16.msra.mxu0 0
    %884 = vmatprep.subr.bf16.mxu0 0
    %885 = vmatpush2.bf16.msra.mxu0 0
    %886 = vmatprep.mubr.bf16.mxu0 0
    %887 = vmatmul.mubr.bf16.gmra.mxu0 %v810
    %v888 = vpop.f32.mrf.mxu0
    %v889 = vadd.f32 0.0, %v888
    %v890 = vpop.f32.mrf.mxu0
    %v891 = vpop.f32.mrf.mxu0
    %v892 = vadd.f32 0.0, %v891
    %v893 = vpop.f32.mrf.mxu0
    %894 = vdwg.mxu0
    %v895 = vadd.f32 %v804, %v846
    %v896 = vadd.f32 %v805, %v848
    %v897 = vadd.f32 %v807, %v850
    %v898 = vadd.f32 %v808, %v852
    %v899 = vxor.u32 %v895, 2147483648
    %v900 = vxor.u32 %v896, 2147483648
    %v901 = vxor.u32 %v897, 2147483648
    %v902 = vxor.u32 %v898, 2147483648
    %v903 = vmul.f32 %v899, 1.442695
    %v904 = vpow.pop %v903
    %v905 = vmul.f32 %v900, 1.442695
    %v906 = vpow.pop %v905
    %v907 = vmul.f32 %v901, 1.442695
    %v908 = vpow.pop %v907
    %v909 = vmul.f32 %v902, 1.442695
    %v910 = vpow.pop %v909
    %v911 = vadd.f32 %v904, 1.0
    %v912 = vadd.f32 %v906, 1.0
    %v913 = vadd.f32 %v908, 1.0
    %v914 = vadd.f32 %v910, 1.0
    %v915 = vrcp.pop %v911
    %v916 = vmul.f32 1.0, %v915
    %v917 = vrcp.pop %v912
    %v918 = vmul.f32 1.0, %v917
    %v919 = vrcp.pop %v913
    %v920 = vmul.f32 1.0, %v919
    %v921 = vrcp.pop %v914
    %v922 = vmul.f32 1.0, %v921
    %v923 = vadd.f32 %v889, %v341
    %v924 = vadd.f32 %v892, %v341
    %v925 = vmul.f32 %v916, %v923
    %v926 = vmul.f32 %v920, %v924
    %v927 = vadd.f32 %v806, %v925
    %v928 = vadd.f32 %v809, %v926
    %v929 = vtanh.pop %v927
    %v930 = vtanh.pop %v928
    %v931 = vsub.f32 %v796, %v929
    %v932 = vsub.f32 %v797, %v930
    %v933 = vmul.f32 %v918, %v931
    %v934 = vmul.f32 %v922, %v932
    %v935 = vadd.f32 %v929, %v933
    %v936 = vadd.f32 %v930, %v934
    %p937 = scmp.lt.s32.totalorder %s798, 8
    %s938 = scalar_select %p937, 1, 0
    %v939 = vstv %s938
    %vm940 = vcmp.eq.s32.totalorder %v939, 1
    %v941 = vsel %vm940, %v935, %v796
    %v942 = vsel %vm940, %v936, %v797
    %s943 = sadd.s32 %s53, 5
    %s944 = scalar_lea.vmem [#allocation3], 120
    %v945 = vld [vmem:[%s944] sm:$0xff]
    %v946 = vld [vmem:[%s944 + $0x8] sm:$0xf]
    %v947 = vld [vmem:[%s944 + $0xc] sm:$0xff]
    %v948 = vld [vmem:[%s944 + $0x14] sm:$0xf]
    %v949 = vunpack.c.l.bf16 %v945
    %v950 = vunpack.c.h.bf16 %v945
    %v951 = vunpack.c.l.bf16 %v946
    %v952 = vunpack.c.l.bf16 %v947
    %v953 = vunpack.c.h.bf16 %v947
    %v954 = vunpack.c.l.bf16 %v948
    %v955 = vpack.c.bf16 %v942, %v941
    %956 = vmatprep.subr.bf16.mxu0 %v199
    %957 = vmatpush1.bf16.msra.mxu0 %v198
    %958 = vmatprep.subr.bf16.mxu0 %v196
    %959 = vmatpush1.bf16.msra.mxu0 %v195
    %960 = vmatprep.subr.bf16.mxu0 %v193
    %961 = vmatpush1.bf16.msra.mxu0 %v192
    %962 = vmatprep.subr.bf16.mxu0 %v190
    %963 = vmatpush1.bf16.msra.mxu0 %v189
    %964 = vmatprep.subr.bf16.mxu0 %v187
    %965 = vmatpush1.bf16.msra.mxu0 %v186
    %966 = vmatprep.subr.bf16.mxu0 %v184
    %967 = vmatpush1.bf16.msra.mxu0 %v183
    %968 = vmatprep.subr.bf16.mxu0 %v181
    %969 = vmatpush1.bf16.msra.mxu0 %v180
    %970 = vmatprep.subr.bf16.mxu0 %v178
    %971 = vmatpush1.bf16.msra.mxu0 %v177
    %972 = vmatprep.subr.bf16.mxu0 0
    %973 = vmatpush2.bf16.msra.mxu0 0
    %974 = vmatprep.subr.bf16.mxu0 0
    %975 = vmatpush2.bf16.msra.mxu0 0
    %976 = vmatprep.subr.bf16.mxu0 0
    %977 = vmatpush2.bf16.msra.mxu0 0
    %978 = vmatprep.subr.bf16.mxu0 0
    %979 = vmatpush2.bf16.msra.mxu0 0
    %980 = vmatprep.subr.bf16.mxu0 0
    %981 = vmatpush2.bf16.msra.mxu0 0
    %982 = vmatprep.subr.bf16.mxu0 0
    %983 = vmatpush2.bf16.msra.mxu0 0
    %984 = vmatprep.subr.bf16.mxu0 0
    %985 = vmatpush2.bf16.msra.mxu0 0
    %986 = vmatprep.subr.bf16.mxu0 0
    %987 = vmatpush2.bf16.msra.mxu0 0
    %988 = vmatprep.mubr.bf16.mxu0 0
    %989 = vmatmul.mubr.bf16.gmra.mxu0 %v955
    %v990 = vpop.f32.mrf.mxu0
    %v991 = vadd.f32 0.0, %v990
    %v992 = vpop.f32.mrf.mxu0
    %v993 = vadd.f32 0.0, %v992
    %v994 = vpop.f32.mrf.mxu0
    %v995 = vadd.f32 0.0, %v994
    %v996 = vpop.f32.mrf.mxu0
    %v997 = vadd.f32 0.0, %v996
    %998 = vdwg.mxu0
    %999 = vmatprep.subr.bf16.mxu0 0
    %1000 = vmatpush1.bf16.msra.mxu0 %v200
    %1001 = vmatprep.subr.bf16.mxu0 0
    %1002 = vmatpush1.bf16.msra.mxu0 %v197
    %1003 = vmatprep.subr.bf16.mxu0 0
    %1004 = vmatpush1.bf16.msra.mxu0 %v194
    %1005 = vmatprep.subr.bf16.mxu0 0
    %1006 = vmatpush1.bf16.msra.mxu0 %v191
    %1007 = vmatprep.subr.bf16.mxu0 0
    %1008 = vmatpush1.bf16.msra.mxu0 %v188
    %1009 = vmatprep.subr.bf16.mxu0 0
    %1010 = vmatpush1.bf16.msra.mxu0 %v185
    %1011 = vmatprep.subr.bf16.mxu0 0
    %1012 = vmatpush1.bf16.msra.mxu0 %v182
    %1013 = vmatprep.subr.bf16.mxu0 0
    %1014 = vmatpush1.bf16.msra.mxu0 %v179
    %1015 = vmatprep.subr.bf16.mxu0 0
    %1016 = vmatpush2.bf16.msra.mxu0 0
    %1017 = vmatprep.subr.bf16.mxu0 0
    %1018 = vmatpush2.bf16.msra.mxu0 0
    %1019 = vmatprep.subr.bf16.mxu0 0
    %1020 = vmatpush2.bf16.msra.mxu0 0
    %1021 = vmatprep.subr.bf16.mxu0 0
    %1022 = vmatpush2.bf16.msra.mxu0 0
    %1023 = vmatprep.subr.bf16.mxu0 0
    %1024 = vmatpush2.bf16.msra.mxu0 0
    %1025 = vmatprep.subr.bf16.mxu0 0
    %1026 = vmatpush2.bf16.msra.mxu0 0
    %1027 = vmatprep.subr.bf16.mxu0 0
    %1028 = vmatpush2.bf16.msra.mxu0 0
    %1029 = vmatprep.subr.bf16.mxu0 0
    %1030 = vmatpush2.bf16.msra.mxu0 0
    %1031 = vmatprep.mubr.bf16.mxu0 0
    %1032 = vmatmul.mubr.bf16.gmra.mxu0 %v955
    %v1033 = vpop.f32.mrf.mxu0
    %v1034 = vadd.f32 0.0, %v1033
    %v1035 = vpop.f32.mrf.mxu0
    %v1036 = vpop.f32.mrf.mxu0
    %v1037 = vadd.f32 0.0, %v1036
    %v1038 = vpop.f32.mrf.mxu0
    %1039 = vdwg.mxu0
    %v1040 = vadd.f32 %v949, %v991
    %v1041 = vadd.f32 %v950, %v993
    %v1042 = vadd.f32 %v952, %v995
    %v1043 = vadd.f32 %v953, %v997
    %v1044 = vxor.u32 %v1040, 2147483648
    %v1045 = vxor.u32 %v1041, 2147483648
    %v1046 = vxor.u32 %v1042, 2147483648
    %v1047 = vxor.u32 %v1043, 2147483648
    %v1048 = vmul.f32 %v1044, 1.442695
    %v1049 = vpow.pop %v1048
    %v1050 = vmul.f32 %v1045, 1.442695
    %v1051 = vpow.pop %v1050
    %v1052 = vmul.f32 %v1046, 1.442695
    %v1053 = vpow.pop %v1052
    %v1054 = vmul.f32 %v1047, 1.442695
    %v1055 = vpow.pop %v1054
    %v1056 = vadd.f32 %v1049, 1.0
    %v1057 = vadd.f32 %v1051, 1.0
    %v1058 = vadd.f32 %v1053, 1.0
    %v1059 = vadd.f32 %v1055, 1.0
    %v1060 = vrcp.pop %v1056
    %v1061 = vmul.f32 1.0, %v1060
    %v1062 = vrcp.pop %v1057
    %v1063 = vmul.f32 1.0, %v1062
    %v1064 = vrcp.pop %v1058
    %v1065 = vmul.f32 1.0, %v1064
    %v1066 = vrcp.pop %v1059
    %v1067 = vmul.f32 1.0, %v1066
    %v1068 = vadd.f32 %v1034, %v341
    %v1069 = vadd.f32 %v1037, %v341
    %v1070 = vmul.f32 %v1061, %v1068
    %v1071 = vmul.f32 %v1065, %v1069
    %v1072 = vadd.f32 %v951, %v1070
    %v1073 = vadd.f32 %v954, %v1071
    %v1074 = vtanh.pop %v1072
    %v1075 = vtanh.pop %v1073
    %v1076 = vsub.f32 %v941, %v1074
    %v1077 = vsub.f32 %v942, %v1075
    %v1078 = vmul.f32 %v1063, %v1076
    %v1079 = vmul.f32 %v1067, %v1077
    %v1080 = vadd.f32 %v1074, %v1078
    %v1081 = vadd.f32 %v1075, %v1079
    %p1082 = scmp.lt.s32.totalorder %s943, 8
    %s1083 = scalar_select %p1082, 1, 0
    %v1084 = vstv %s1083
    %vm1085 = vcmp.eq.s32.totalorder %v1084, 1
    %v1086 = vsel %vm1085, %v1080, %v941
    %v1087 = vsel %vm1085, %v1081, %v942
    %s1088 = sadd.s32 %s53, 6
    %s1089 = scalar_lea.vmem [#allocation3], 144
    %v1090 = vld [vmem:[%s1089] sm:$0xff]
    %v1091 = vld [vmem:[%s1089 + $0x8] sm:$0xf]
    %v1092 = vld [vmem:[%s1089 + $0xc] sm:$0xff]
    %v1093 = vld [vmem:[%s1089 + $0x14] sm:$0xf]
    %v1094 = vunpack.c.l.bf16 %v1090
    %v1095 = vunpack.c.h.bf16 %v1090
    %v1096 = vunpack.c.l.bf16 %v1091
    %v1097 = vunpack.c.l.bf16 %v1092
    %v1098 = vunpack.c.h.bf16 %v1092
    %v1099 = vunpack.c.l.bf16 %v1093
    %v1100 = vpack.c.bf16 %v1087, %v1086
    %1101 = vmatprep.subr.bf16.mxu0 %v199
    %1102 = vmatpush1.bf16.msra.mxu0 %v198
    %1103 = vmatprep.subr.bf16.mxu0 %v196
    %1104 = vmatpush1.bf16.msra.mxu0 %v195
    %1105 = vmatprep.subr.bf16.mxu0 %v193
    %1106 = vmatpush1.bf16.msra.mxu0 %v192
    %1107 = vmatprep.subr.bf16.mxu0 %v190
    %1108 = vmatpush1.bf16.msra.mxu0 %v189
    %1109 = vmatprep.subr.bf16.mxu0 %v187
    %1110 = vmatpush1.bf16.msra.mxu0 %v186
    %1111 = vmatprep.subr.bf16.mxu0 %v184
    %1112 = vmatpush1.bf16.msra.mxu0 %v183
    %1113 = vmatprep.subr.bf16.mxu0 %v181
    %1114 = vmatpush1.bf16.msra.mxu0 %v180
    %1115 = vmatprep.subr.bf16.mxu0 %v178
    %1116 = vmatpush1.bf16.msra.mxu0 %v177
    %1117 = vmatprep.subr.bf16.mxu0 0
    %1118 = vmatpush2.bf16.msra.mxu0 0
    %1119 = vmatprep.subr.bf16.mxu0 0
    %1120 = vmatpush2.bf16.msra.mxu0 0
    %1121 = vmatprep.subr.bf16.mxu0 0
    %1122 = vmatpush2.bf16.msra.mxu0 0
    %1123 = vmatprep.subr.bf16.mxu0 0
    %1124 = vmatpush2.bf16.msra.mxu0 0
    %1125 = vmatprep.subr.bf16.mxu0 0
    %1126 = vmatpush2.bf16.msra.mxu0 0
    %1127 = vmatprep.subr.bf16.mxu0 0
    %1128 = vmatpush2.bf16.msra.mxu0 0
    %1129 = vmatprep.subr.bf16.mxu0 0
    %1130 = vmatpush2.bf16.msra.mxu0 0
    %1131 = vmatprep.subr.bf16.mxu0 0
    %1132 = vmatpush2.bf16.msra.mxu0 0
    %1133 = vmatprep.mubr.bf16.mxu0 0
    %1134 = vmatmul.mubr.bf16.gmra.mxu0 %v1100
    %v1135 = vpop.f32.mrf.mxu0
    %v1136 = vadd.f32 0.0, %v1135
    %v1137 = vpop.f32.mrf.mxu0
    %v1138 = vadd.f32 0.0, %v1137
    %v1139 = vpop.f32.mrf.mxu0
    %v1140 = vadd.f32 0.0, %v1139
    %v1141 = vpop.f32.mrf.mxu0
    %v1142 = vadd.f32 0.0, %v1141
    %1143 = vdwg.mxu0
    %1144 = vmatprep.subr.bf16.mxu0 0
    %1145 = vmatpush1.bf16.msra.mxu0 %v200
    %1146 = vmatprep.subr.bf16.mxu0 0
    %1147 = vmatpush1.bf16.msra.mxu0 %v197
    %1148 = vmatprep.subr.bf16.mxu0 0
    %1149 = vmatpush1.bf16.msra.mxu0 %v194
    %1150 = vmatprep.subr.bf16.mxu0 0
    %1151 = vmatpush1.bf16.msra.mxu0 %v191
    %1152 = vmatprep.subr.bf16.mxu0 0
    %1153 = vmatpush1.bf16.msra.mxu0 %v188
    %1154 = vmatprep.subr.bf16.mxu0 0
    %1155 = vmatpush1.bf16.msra.mxu0 %v185
    %1156 = vmatprep.subr.bf16.mxu0 0
    %1157 = vmatpush1.bf16.msra.mxu0 %v182
    %1158 = vmatprep.subr.bf16.mxu0 0
    %1159 = vmatpush1.bf16.msra.mxu0 %v179
    %1160 = vmatprep.subr.bf16.mxu0 0
    %1161 = vmatpush2.bf16.msra.mxu0 0
    %1162 = vmatprep.subr.bf16.mxu0 0
    %1163 = vmatpush2.bf16.msra.mxu0 0
    %1164 = vmatprep.subr.bf16.mxu0 0
    %1165 = vmatpush2.bf16.msra.mxu0 0
    %1166 = vmatprep.subr.bf16.mxu0 0
    %1167 = vmatpush2.bf16.msra.mxu0 0
    %1168 = vmatprep.subr.bf16.mxu0 0
    %1169 = vmatpush2.bf16.msra.mxu0 0
    %1170 = vmatprep.subr.bf16.mxu0 0
    %1171 = vmatpush2.bf16.msra.mxu0 0
    %1172 = vmatprep.subr.bf16.mxu0 0
    %1173 = vmatpush2.bf16.msra.mxu0 0
    %1174 = vmatprep.subr.bf16.mxu0 0
    %1175 = vmatpush2.bf16.msra.mxu0 0
    %1176 = vmatprep.mubr.bf16.mxu0 0
    %1177 = vmatmul.mubr.bf16.gmra.mxu0 %v1100
    %v1178 = vpop.f32.mrf.mxu0
    %v1179 = vadd.f32 0.0, %v1178
    %v1180 = vpop.f32.mrf.mxu0
    %v1181 = vpop.f32.mrf.mxu0
    %v1182 = vadd.f32 0.0, %v1181
    %v1183 = vpop.f32.mrf.mxu0
    %1184 = vdwg.mxu0
    %v1185 = vadd.f32 %v1094, %v1136
    %v1186 = vadd.f32 %v1095, %v1138
    %v1187 = vadd.f32 %v1097, %v1140
    %v1188 = vadd.f32 %v1098, %v1142
    %v1189 = vxor.u32 %v1185, 2147483648
    %v1190 = vxor.u32 %v1186, 2147483648
    %v1191 = vxor.u32 %v1187, 2147483648
    %v1192 = vxor.u32 %v1188, 2147483648
    %v1193 = vmul.f32 %v1189, 1.442695
    %v1194 = vpow.pop %v1193
    %v1195 = vmul.f32 %v1190, 1.442695
    %v1196 = vpow.pop %v1195
    %v1197 = vmul.f32 %v1191, 1.442695
    %v1198 = vpow.pop %v1197
    %v1199 = vmul.f32 %v1192, 1.442695
    %v1200 = vpow.pop %v1199
    %v1201 = vadd.f32 %v1194, 1.0
    %v1202 = vadd.f32 %v1196, 1.0
    %v1203 = vadd.f32 %v1198, 1.0
    %v1204 = vadd.f32 %v1200, 1.0
    %v1205 = vrcp.pop %v1201
    %v1206 = vmul.f32 1.0, %v1205
    %v1207 = vrcp.pop %v1202
    %v1208 = vmul.f32 1.0, %v1207
    %v1209 = vrcp.pop %v1203
    %v1210 = vmul.f32 1.0, %v1209
    %v1211 = vrcp.pop %v1204
    %v1212 = vmul.f32 1.0, %v1211
    %v1213 = vadd.f32 %v1179, %v341
    %v1214 = vadd.f32 %v1182, %v341
    %v1215 = vmul.f32 %v1206, %v1213
    %v1216 = vmul.f32 %v1210, %v1214
    %v1217 = vadd.f32 %v1096, %v1215
    %v1218 = vadd.f32 %v1099, %v1216
    %v1219 = vtanh.pop %v1217
    %v1220 = vtanh.pop %v1218
    %v1221 = vsub.f32 %v1086, %v1219
    %v1222 = vsub.f32 %v1087, %v1220
    %v1223 = vmul.f32 %v1208, %v1221
    %v1224 = vmul.f32 %v1212, %v1222
    %v1225 = vadd.f32 %v1219, %v1223
    %v1226 = vadd.f32 %v1220, %v1224
    %p1227 = scmp.lt.s32.totalorder %s1088, 8
    %s1228 = scalar_select %p1227, 1, 0
    %v1229 = vstv %s1228
    %vm1230 = vcmp.eq.s32.totalorder %v1229, 1
    %v1231 = vsel %vm1230, %v1225, %v1086
    %v1232 = vsel %vm1230, %v1226, %v1087
    %s1233 = sadd.s32 %s53, 7
    %s1234 = scalar_lea.vmem [#allocation3], 168
    %v1235 = vld [vmem:[%s1234] sm:$0xff]
    %v1236 = vld [vmem:[%s1234 + $0x8] sm:$0xf]
    %v1237 = vld [vmem:[%s1234 + $0xc] sm:$0xff]
    %v1238 = vld [vmem:[%s1234 + $0x14] sm:$0xf]
    %v1239 = vunpack.c.l.bf16 %v1235
    %v1240 = vunpack.c.h.bf16 %v1235
    %v1241 = vunpack.c.l.bf16 %v1236
    %v1242 = vunpack.c.l.bf16 %v1237
    %v1243 = vunpack.c.h.bf16 %v1237
    %v1244 = vunpack.c.l.bf16 %v1238
    %v1245 = vpack.c.bf16 %v1232, %v1231
    %1246 = vmatprep.subr.bf16.mxu0 %v199
    %1247 = vmatpush1.bf16.msra.mxu0 %v198
    %1248 = vmatprep.subr.bf16.mxu0 %v196
    %1249 = vmatpush1.bf16.msra.mxu0 %v195
    %1250 = vmatprep.subr.bf16.mxu0 %v193
    %1251 = vmatpush1.bf16.msra.mxu0 %v192
    %1252 = vmatprep.subr.bf16.mxu0 %v190
    %1253 = vmatpush1.bf16.msra.mxu0 %v189
    %1254 = vmatprep.subr.bf16.mxu0 %v187
    %1255 = vmatpush1.bf16.msra.mxu0 %v186
    %1256 = vmatprep.subr.bf16.mxu0 %v184
    %1257 = vmatpush1.bf16.msra.mxu0 %v183
    %1258 = vmatprep.subr.bf16.mxu0 %v181
    %1259 = vmatpush1.bf16.msra.mxu0 %v180
    %1260 = vmatprep.subr.bf16.mxu0 %v178
    %1261 = vmatpush1.bf16.msra.mxu0 %v177
    %1262 = vmatprep.subr.bf16.mxu0 0
    %1263 = vmatpush2.bf16.msra.mxu0 0
    %1264 = vmatprep.subr.bf16.mxu0 0
    %1265 = vmatpush2.bf16.msra.mxu0 0
    %1266 = vmatprep.subr.bf16.mxu0 0
    %1267 = vmatpush2.bf16.msra.mxu0 0
    %1268 = vmatprep.subr.bf16.mxu0 0
    %1269 = vmatpush2.bf16.msra.mxu0 0
    %1270 = vmatprep.subr.bf16.mxu0 0
    %1271 = vmatpush2.bf16.msra.mxu0 0
    %1272 = vmatprep.subr.bf16.mxu0 0
    %1273 = vmatpush2.bf16.msra.mxu0 0
    %1274 = vmatprep.subr.bf16.mxu0 0
    %1275 = vmatpush2.bf16.msra.mxu0 0
    %1276 = vmatprep.subr.bf16.mxu0 0
    %1277 = vmatpush2.bf16.msra.mxu0 0
    %1278 = vmatprep.mubr.bf16.mxu0 0
    %1279 = vmatmul.mubr.bf16.gmra.mxu0 %v1245
    %v1280 = vpop.f32.mrf.mxu0
    %v1281 = vadd.f32 0.0, %v1280
    %v1282 = vpop.f32.mrf.mxu0
    %v1283 = vadd.f32 0.0, %v1282
    %v1284 = vpop.f32.mrf.mxu0
    %v1285 = vadd.f32 0.0, %v1284
    %v1286 = vpop.f32.mrf.mxu0
    %v1287 = vadd.f32 0.0, %v1286
    %1288 = vdwg.mxu0
    %1289 = vmatprep.subr.bf16.mxu0 0
    %1290 = vmatpush1.bf16.msra.mxu0 %v200
    %1291 = vmatprep.subr.bf16.mxu0 0
    %1292 = vmatpush1.bf16.msra.mxu0 %v197
    %1293 = vmatprep.subr.bf16.mxu0 0
    %1294 = vmatpush1.bf16.msra.mxu0 %v194
    %1295 = vmatprep.subr.bf16.mxu0 0
    %1296 = vmatpush1.bf16.msra.mxu0 %v191
    %1297 = vmatprep.subr.bf16.mxu0 0
    %1298 = vmatpush1.bf16.msra.mxu0 %v188
    %1299 = vmatprep.subr.bf16.mxu0 0
    %1300 = vmatpush1.bf16.msra.mxu0 %v185
    %1301 = vmatprep.subr.bf16.mxu0 0
    %1302 = vmatpush1.bf16.msra.mxu0 %v182
    %1303 = vmatprep.subr.bf16.mxu0 0
    %1304 = vmatpush1.bf16.msra.mxu0 %v179
    %1305 = vmatprep.subr.bf16.mxu0 0
    %1306 = vmatpush2.bf16.msra.mxu0 0
    %1307 = vmatprep.subr.bf16.mxu0 0
    %1308 = vmatpush2.bf16.msra.mxu0 0
    %1309 = vmatprep.subr.bf16.mxu0 0
    %1310 = vmatpush2.bf16.msra.mxu0 0
    %1311 = vmatprep.subr.bf16.mxu0 0
    %1312 = vmatpush2.bf16.msra.mxu0 0
    %1313 = vmatprep.subr.bf16.mxu0 0
    %1314 = vmatpush2.bf16.msra.mxu0 0
    %1315 = vmatprep.subr.bf16.mxu0 0
    %1316 = vmatpush2.bf16.msra.mxu0 0
    %1317 = vmatprep.subr.bf16.mxu0 0
    %1318 = vmatpush2.bf16.msra.mxu0 0
    %1319 = vmatprep.subr.bf16.mxu0 0
    %1320 = vmatpush2.bf16.msra.mxu0 0
    %1321 = vmatprep.mubr.bf16.mxu0 0
    %1322 = vmatmul.mubr.bf16.gmra.mxu0 %v1245
    %v1323 = vpop.f32.mrf.mxu0
    %v1324 = vadd.f32 0.0, %v1323
    %v1325 = vpop.f32.mrf.mxu0
    %v1326 = vpop.f32.mrf.mxu0
    %v1327 = vadd.f32 0.0, %v1326
    %v1328 = vpop.f32.mrf.mxu0
    %1329 = vdwg.mxu0
    %v1330 = vadd.f32 %v1239, %v1281
    %v1331 = vadd.f32 %v1240, %v1283
    %v1332 = vadd.f32 %v1242, %v1285
    %v1333 = vadd.f32 %v1243, %v1287
    %v1334 = vxor.u32 %v1330, 2147483648
    %v1335 = vxor.u32 %v1331, 2147483648
    %v1336 = vxor.u32 %v1332, 2147483648
    %v1337 = vxor.u32 %v1333, 2147483648
    %v1338 = vmul.f32 %v1334, 1.442695
    %v1339 = vpow.pop %v1338
    %v1340 = vmul.f32 %v1335, 1.442695
    %v1341 = vpow.pop %v1340
    %v1342 = vmul.f32 %v1336, 1.442695
    %v1343 = vpow.pop %v1342
    %v1344 = vmul.f32 %v1337, 1.442695
    %v1345 = vpow.pop %v1344
    %v1346 = vadd.f32 %v1339, 1.0
    %v1347 = vadd.f32 %v1341, 1.0
    %v1348 = vadd.f32 %v1343, 1.0
    %v1349 = vadd.f32 %v1345, 1.0
    %v1350 = vrcp.pop %v1346
    %v1351 = vmul.f32 1.0, %v1350
    %v1352 = vrcp.pop %v1347
    %v1353 = vmul.f32 1.0, %v1352
    %v1354 = vrcp.pop %v1348
    %v1355 = vmul.f32 1.0, %v1354
    %v1356 = vrcp.pop %v1349
    %v1357 = vmul.f32 1.0, %v1356
    %v1358 = vadd.f32 %v1324, %v341
    %v1359 = vadd.f32 %v1327, %v341
    %v1360 = vmul.f32 %v1351, %v1358
    %v1361 = vmul.f32 %v1355, %v1359
    %v1362 = vadd.f32 %v1241, %v1360
    %v1363 = vadd.f32 %v1244, %v1361
    %v1364 = vtanh.pop %v1362
    %v1365 = vtanh.pop %v1363
    %v1366 = vsub.f32 %v1231, %v1364
    %v1367 = vsub.f32 %v1232, %v1365
    %v1368 = vmul.f32 %v1353, %v1366
    %v1369 = vmul.f32 %v1357, %v1367
    %v1370 = vadd.f32 %v1364, %v1368
    %v1371 = vadd.f32 %v1365, %v1369
    %p1372 = scmp.lt.s32.totalorder %s1233, 8
    %s1373 = scalar_select %p1372, 1, 0
    %v1374 = vstv %s1373
    %vm1375 = vcmp.eq.s32.totalorder %v1374, 1
    %v1376 = vsel %vm1375, %v1370, %v1231
    %v1377 = vsel %vm1375, %v1371, %v1232
    %1378 = vst [vmem:[#allocation2] sm:$0xff] %v1376
    %1379 = vst [vmem:[#allocation2 + $0x8] sm:$0xff] %v1377
    // Predicated region
    $region26: #{tpu_custom_call.1} parent=1 // pred_check
      %p1380 = pneg %p44
    $region27: #{tpu_custom_call.1} parent=1 // pred_check_branch
      %1382 = sbr.rel (%p1380) target = $region29
    $region28: #{tpu_custom_call.1} parent=1 // pred_region
      %1383 = vst [vmem:[#allocation8] sm:$0xff] %v1376
      %1384 = vst [vmem:[#allocation8 + $0x8] sm:$0xff] %v1377
    $region29: #{tpu_custom_call.1} parent=1 // pred_fallthru
      _
    // Predicated region
    $region30: #{tpu_custom_call.1} parent=1 // pred_check
      _
    $region31: #{tpu_custom_call.1} parent=1 // pred_check_branch
      %1386 = sbr.rel (0) target = $region33
    $region32: #{tpu_custom_call.1} parent=1 // pred_region
      %s1388 = ssub.s32 256, 256
      %1389 = vsyncadd [#allocation5], %s1388
      %s1390 = sshll.u32 [#allocation8], 4
      %s1391 = int_to_ptr.vmem [resolvable:$true] %s1390
      %1396 = dma.vmem_to_hbm [thread:$0]  %s1391, 256, %s3, [#allocation5], 128, 128, 8
    $region33: #{tpu_custom_call.1} parent=1 // pred_fallthru
      _
    // Predicated region
    $region34: #{tpu_custom_call.1} parent=1 // pred_check
      _
    $region35: #{tpu_custom_call.1} parent=1 // pred_check_branch
      %1398 = sbr.rel (0) target = $region37
    $region36: #{tpu_custom_call.1} parent=1 // pred_region
      %1399 = dma.done [#allocation5], 256
    $region37: #{tpu_custom_call.1} parent=1 // pred_fallthru
      _
    %1400 = vsyncpa [#allocation4], 1
    %1401 = vsyncpa [#allocation7], 1
    %1402 = vsyncpa [#allocation5], 1

</llo_original>
